<compile_context>
chip_gen: v7x
topology: tpu7x:2x2x1
jax: 0.10.0
libtpu: 0.0.40
codegen_flags: <defaults>
</compile_context>

<pallas_src>
import functools

import jax
import jax.numpy as jnp
from jax import lax
from jax.experimental import pallas as pl
from jax.experimental.pallas import tpu as pltpu


def _round_up(x, m):
    return ((x + m - 1) // m) * m


# ---------------------------------------------------------------------------
# One-time doc-store prep: L2-normalize rows, cast to bf16, and emit the
# lane-dense [D, N] layout directly (fused transpose -- no extra HBM pass).
# ---------------------------------------------------------------------------
def _doc_prep_kernel(doc_ref, out_ref):
    d = doc_ref[...].astype(jnp.float32)                      # (tn, D)
    d_n = d * lax.rsqrt(jnp.sum(d * d, axis=-1, keepdims=True) + 1e-12)
    out_ref[...] = jnp.transpose(d_n).astype(jnp.bfloat16)    # (D, tn)


# ---------------------------------------------------------------------------
# Retrieval kernel.  Grid = (query tiles [parallel], doc tiles [arbitrary]).
# Per doc tile: [tq,D] x [D,tn] bf16 matmul (f32 accum) + streaming top-k
# merge into VMEM scratch; only [Q,K] ids/scores ever reach HBM.
# ---------------------------------------------------------------------------
def _rag_topk_kernel(q_ref, w_ref, doc_ref, idx_ref, val_ref,
                     qbf_scr, val_scr, idx_scr, *, topk, n_valid):
    j = pl.program_id(1)
    nj = pl.num_programs(1)
    tq = q_ref.shape[0]
    tn = doc_ref.shape[1]
    lk = val_scr.shape[1]

    neg_inf = jnp.array(-jnp.inf, jnp.float32)

    # ---- once per query tile: embed + L2-normalize queries (bf16 scratch,
    #      cast hoisted out of the doc loop), reset running top-k.
    @pl.when(j == 0)
    def _init():
        q_emb = jnp.dot(q_ref[...], w_ref[...], preferred_element_type=jnp.float32)
        inv = lax.rsqrt(jnp.sum(q_emb * q_emb, axis=-1, keepdims=True) + 1e-12)
        qbf_scr[...] = (q_emb * inv).astype(jnp.bfloat16)
        val_scr[...] = jnp.full(val_scr.shape, -jnp.inf, val_scr.dtype)
        idx_scr[...] = jnp.zeros(idx_scr.shape, idx_scr.dtype)

    # ---- similarity for this doc tile: [tq, D] x [D, tn] -> [tq, tn], f32 accum
    scores = jnp.dot(qbf_scr[...], doc_ref[...], preferred_element_type=jnp.float32)

    # ---- mask padded doc columns and non-finite scores so they never win
    tile_idx = j * tn + lax.broadcasted_iota(jnp.int32, (tq, tn), 1)
    valid = jnp.logical_and(tile_idx < n_valid, jnp.logical_not(jnp.isnan(scores)))
    scores = jnp.where(valid, scores, neg_inf)

    # ---- merge running top-k with this tile (lane-aligned concat: lk | tn)
    comb_val = jnp.concatenate([val_scr[...], scores], axis=-1)
    comb_idx = jnp.concatenate([idx_scr[...], tile_idx], axis=-1)

    big = jnp.array(jnp.iinfo(jnp.int32).max, jnp.int32)
    lane = lax.broadcasted_iota(jnp.int32, (tq, lk), 1)
    new_val = jnp.full((tq, lk), -jnp.inf, jnp.float32)
    new_idx = jnp.zeros((tq, lk), jnp.int32)
    for i in range(topk):                                    # static unroll (topk small)
        m = jnp.max(comb_val, axis=-1, keepdims=True)        # (tq, 1) best score
        hit = comb_val == m
        sel = jnp.min(jnp.where(hit, comb_idx, big),         # lowest global id on ties
                      axis=-1, keepdims=True)
        new_val = jnp.where(lane == i, m, new_val)           # carried in registers
        new_idx = jnp.where(lane == i, sel, new_idx)
        comb_val = jnp.where(jnp.logical_and(hit, comb_idx == sel), neg_inf, comb_val)

    # two lane-dense full-width scratch stores per doc tile
    val_scr[...] = new_val
    idx_scr[...] = new_idx

    # ---- last doc tile: emit only the [tq, K] ids / scores
    @pl.when(j == nj - 1)
    def _fin():
        idx_ref[...] = idx_scr[:, :topk]
        val_ref[...] = val_scr[:, :topk]


def _vmem_step_bytes(tq, tn, F, D, lk, topk):
    """Conservative per-step VMEM estimate (double-buffered I/O + scratch + temps)."""
    in_bytes = 2 * (tq * F * 4) + 2 * (F * D * 4) + 2 * (D * tn * 2)
    out_bytes = 2 * 2 * tq * topk * 8
    scratch = tq * D * 2 + tq * lk * 8
    temps = 8 * tq * (lk + tn) * 4
    return in_bytes + out_bytes + scratch + temps


def rag_retrieve_topk(q_feat, w_embed, doc_emb, *, topk, tq=256, tn=512):
    """Dense retrieval: returns (topk_doc_ids [Q,K] int32, topk_scores [Q,K] f32)."""
    Q, F = q_feat.shape
    F2, D = w_embed.shape
    N, D2 = doc_emb.shape
    assert F == F2 and D == D2
    assert 1 <= topk <= N

    lk = _round_up(topk, 128)                                # lane-padded running buffer

    # ---- pick tiles: clamp to problem size, keep (8,128)-aligned, then shrink
    #      if the working set would exceed a v7x-safe VMEM budget (~40 MiB).
    tq_eff = min(tq, _round_up(Q, 8))
    tn_eff = min(tn, _round_up(N, 128))
    VMEM_BUDGET = 40 * 1024 * 1024
    while (_vmem_step_bytes(tq_eff, tn_eff, F, D, lk, topk) > VMEM_BUDGET
           and tn_eff > 256 and (tn_eff // 2) % 128 == 0):
        tn_eff //= 2
    while (_vmem_step_bytes(tq_eff, tn_eff, F, D, lk, topk) > VMEM_BUDGET
           and tq_eff >= 128):
        tq_eff //= 2

    # ---- pad ragged Q / N; keep an even number of query tiles for v7x's 2 TCs
    Q_pad = _round_up(Q, tq_eff)
    nq = Q_pad // tq_eff
    if nq > 1 and nq % 2 == 1:
        Q_pad += tq_eff
        nq += 1
    N_pad = _round_up(N, tn_eff)
    nj = N_pad // tn_eff

    q_in = q_feat
    if Q_pad != Q:
        q_in = jnp.pad(q_feat, ((0, Q_pad - Q), (0, 0)))
    doc_in = doc_emb
    if N_pad != N:
        doc_in = jnp.pad(doc_emb, ((0, N_pad - N), (0, 0)))

    # ---- one-time doc-store prep: normalize + bf16 + fused [N,D]->[D,N] relayout
    doc_t = pl.pallas_call(
        _doc_prep_kernel,
        out_shape=jax.ShapeDtypeStruct((D, N_pad), jnp.bfloat16),
        grid=(nj,),
        in_specs=[pl.BlockSpec((tn_eff, D), lambda j: (j, 0))],
        out_specs=pl.BlockSpec((D, tn_eff), lambda j: (0, j)),
        compiler_params=pltpu.CompilerParams(dimension_semantics=("parallel",)),
    )(doc_in)

    step_bytes = _vmem_step_bytes(tq_eff, tn_eff, F, D, lk, topk)
    vmem_limit = int(min(48 * 1024 * 1024, max(16 * 1024 * 1024, 2 * step_bytes)))

    flops = 2 * Q_pad * F * D + 2 * Q_pad * D * N_pad
    bytes_accessed = (Q_pad * F * 4 + F * D * 4
                      + nq * N_pad * D * 2 + Q_pad * topk * 8)

    kernel = functools.partial(_rag_topk_kernel, topk=topk, n_valid=N)
    idx, val = pl.pallas_call(
        kernel,
        out_shape=(jax.ShapeDtypeStruct((Q_pad, topk), jnp.int32),
                   jax.ShapeDtypeStruct((Q_pad, topk), jnp.float32)),
        grid=(nq, nj),
        in_specs=[pl.BlockSpec((tq_eff, F), lambda i, j: (i, 0)),
                  pl.BlockSpec((F, D), lambda i, j: (0, 0)),
                  pl.BlockSpec((D, tn_eff), lambda i, j: (0, j))],
        out_specs=(pl.BlockSpec((tq_eff, topk), lambda i, j: (i, 0)),
                   pl.BlockSpec((tq_eff, topk), lambda i, j: (i, 0))),
        scratch_shapes=[pltpu.VMEM((tq_eff, D), jnp.bfloat16),   # normalized bf16 queries
                        pltpu.VMEM((tq_eff, lk), jnp.float32),   # running top-k values
                        pltpu.VMEM((tq_eff, lk), jnp.int32)],    # running top-k doc ids
        compiler_params=pltpu.CompilerParams(
            dimension_semantics=("parallel", "arbitrary"),
            vmem_limit_bytes=vmem_limit),
        cost_estimate=pl.CostEstimate(flops=flops, transcendentals=Q_pad + N_pad,
                                      bytes_accessed=bytes_accessed),
    )(q_in, w_embed, doc_t)

    return idx[:Q], val[:Q]


# TODO(synk): the LLM prompt construction / chain.invoke re-ranking and the
# DataLoader / embedding-store / LocalTopKDocumentsStore I/O have no Pallas
# equivalent; only the dense retrieval (embed + cosine-sim + top-k) is here.


if __name__ == "__main__":
    # Small deterministic setting consistent with the forward pass: Q queries,
    # F raw query features, D embedding dim, N docs in the store, K = retrieval_topk.
    # TQ/TN chosen so the grid exercises both the query-parallel axis (2 tiles,
    # even count -> both v7x TCs) and the streamed doc axis (2 tiles -> real
    # streaming top-k merge).
    Q, F, D, N, K = 64, 128, 256, 1024, 10
    TQ, TN = 32, 512

    key = jax.random.PRNGKey(0)
    kq, kw, kd = jax.random.split(key, 3)
    q_feat = jax.random.normal(kq, (Q, F), dtype=jnp.float32)
    w_embed = jax.random.normal(kw, (F, D), dtype=jnp.float32) * 0.1
    doc_emb = jax.random.normal(kd, (N, D), dtype=jnp.float32)

    topk_idx, topk_val = rag_retrieve_topk(q_feat, w_embed, doc_emb,
                                           topk=K, tq=TQ, tn=TN)
    jax.block_until_ready((topk_idx, topk_val))

    # Reference A: pure f32 math (loose tolerance: kernel streams docs in bf16).
    q_emb = jnp.dot(q_feat, w_embed, preferred_element_type=jnp.float32,
                    precision=lax.Precision.HIGHEST)
    q_n = q_emb * lax.rsqrt(jnp.sum(q_emb * q_emb, axis=-1, keepdims=True) + 1e-12)
    d_n = doc_emb * lax.rsqrt(jnp.sum(doc_emb * doc_emb, axis=-1, keepdims=True) + 1e-12)
    ref_val_f32, _ = lax.top_k(jnp.dot(q_n, d_n.T, preferred_element_type=jnp.float32,
                                       precision=lax.Precision.HIGHEST), K)

    # Reference B: same numerics as the kernel (bf16 operands, f32 accumulation).
    ref_scores = jnp.dot(q_n.astype(jnp.bfloat16), d_n.astype(jnp.bfloat16).T,
                         preferred_element_type=jnp.float32)
    ref_val, ref_idx = lax.top_k(ref_scores, K)

    assert jnp.allclose(topk_val, ref_val, atol=5e-3), "top-k value mismatch (bf16 ref)"
    assert jnp.allclose(topk_val, ref_val_f32, atol=3e-2), "top-k value mismatch (f32 ref)"
    idx_ok = bool(jnp.array_equal(topk_idx, ref_idx))
    if not idx_ok:
        # tolerate index swaps only among (near-)tied scores
        sel_scores = jnp.take_along_axis(ref_scores, topk_idx, axis=1)
        idx_ok = bool(jnp.allclose(sel_scores, ref_val, atol=5e-3))
    assert idx_ok, "top-k index mismatch"

    print("KERNEL_OK")
</pallas_src>

<mosaic_0001>
module attributes {stable_mosaic.version = 11 : i64} {
  func.func @_doc_prep_kernel(%arg0: i32, %arg1: memref<512x256xf32, #tpu.memory_space<vmem>>, %arg2: memref<256x512xbf16, #tpu.memory_space<vmem>>) attributes {dimension_semantics = [#tpu.dimension_semantics<parallel>], iteration_bounds = array<i64: 2>, scalar_prefetch = 0 : i64, scratch_operands = 0 : i64, tpu.core_type = #tpu.core_type<tc>, window_params = [{transform_indices = @transform_0, window_bounds = array<i64: 512, 256>}, {transform_indices = @transform_1, window_bounds = array<i64: 256, 512>}]} {
    %c0 = arith.constant 0 : index
    %c0_0 = arith.constant 0 : index
    %0 = vector.load %arg1[%c0, %c0_0] : memref<512x256xf32, #tpu.memory_space<vmem>>, vector<512x256xf32>
    %1 = arith.mulf %0, %0 : vector<512x256xf32>
    %cst = arith.constant dense<0.000000e+00> : vector<512xf32>
    %2 = vector.multi_reduction <add>, %1, %cst [1] : vector<512x256xf32> to vector<512xf32>
    %3 = vector.shape_cast %2 : vector<512xf32> to vector<512x1xf32>
    %cst_1 = arith.constant 9.99999996E-13 : f32
    %4 = vector.broadcast %cst_1 : f32 to vector<512x1xf32>
    %5 = arith.addf %3, %4 : vector<512x1xf32>
    %6 = math.rsqrt %5 : vector<512x1xf32>
    %7 = vector.broadcast %6 : vector<512x1xf32> to vector<512x256xf32>
    %8 = arith.mulf %0, %7 : vector<512x256xf32>
    %9 = tpu.transpose %8, [1, 0] : vector<512x256xf32> -> vector<256x512xf32>
    %10 = arith.truncf %9 : vector<256x512xf32> to vector<256x512xbf16>
    %c0_2 = arith.constant 0 : index
    %c0_3 = arith.constant 0 : index
    %11 = vector.load %arg2[%c0_2, %c0_3] : memref<256x512xbf16, #tpu.memory_space<vmem>>, vector<256x512xbf16>
    tpu.vector_store %arg2[%c0_2, %c0_3], %10 {strides = array<i32>} : memref<256x512xbf16, #tpu.memory_space<vmem>>, vector<256x512xbf16>,
    return
  }
  func.func @transform_0(%arg0: i32) -> (i32, i32) {
    %c0_i32 = arith.constant 0 : i32
    %c0_i32_0 = arith.constant 0 : i32
    return %arg0, %c0_i32 : i32, i32
  }
  func.func @transform_1(%arg0: i32) -> (i32, i32) {
    %c0_i32 = arith.constant 0 : i32
    %c0_i32_0 = arith.constant 0 : i32
    return %c0_i32, %arg0 : i32, i32
  }
}

</mosaic_0001>

<llo_original>
// kernel: tpu_custom_call.1
$region0: #{tpu_custom_call.1}
  #allocation0 [shape = 'u32[]', space=smem, size = 0x4, offset = 0x4, fixed_abs, tag = 'smem constant byte address 0x4 - core index']
  #allocation1 [shape = 'u32[144,128]{1,0:T(1,128)}', space=vmem, size = 0x12000, scoped, tag = 'internal scratch']
  %s0 = inlined_call_operand.hbm [shape: f32[1024,256], index: 0, kind: input, shape index: {}]
  %s1 = inlined_call_operand.hbm [shape: bf16[256,1024], index: 1, kind: output, shape index: {}]
  %s2 = sld [smem:[#allocation0]]
  $region41: #{tpu_custom_call.1} parent=0
    _
  %s4 = ssub.s32 1, %s2
  %s5 = scalar_select 0, %s4, %s2
  $region1: #{tpu_custom_call.1} parent=0
    #allocation2 [shape = 'u8[1048576]{0}', space=vmem, size = 0x100000, scoped, tag = 'input window, operand 0']
    #allocation3 [shape = 's32[2]{0}', space=sflag, size = 0x8, scoped, tag = 'scoped memory for tpu_custom_call.1']
    #allocation4 [shape = 's32[2]{0}', space=sflag, size = 0x8, scoped, tag = 'scoped memory for tpu_custom_call.1']
    #allocation5 [shape = 'u8[524288]{0}', space=vmem, size = 0x80000, scoped, tag = 'output window, operand 0']
    %6 = vsyncpa [#allocation3], 0
    %s7 = scalar_lea.sflag [#allocation3], 1
    %8 = vsyncpa %s7, 0
    %9 = vsyncpa [#allocation4], 0
    %s10 = scalar_lea.sflag [#allocation4], 1
    %11 = vsyncpa %s10, 0
    loop: start=0, step=1, limit=4
    $region2: #{tpu_custom_call.1} parent=1 // loop_pre_header
      _
    $region3: #{tpu_custom_call.1} parent=1 // loop_header
      %s13 = sphi 0, %s17
      %p14 = scmp.ge.s32.totalorder %s13, 4
      %s23 = sphi 0, %s25
      %s26 = sphi 0, %s23
      %s27 = sphi 0, %s26
      %s43 = sphi 0, %s27
      %s49 = sphi 0, %s51
      %s52 = sphi 0, %s49
      %s53 = sphi 0, %s52
      %s69 = sphi 0, %s53
    $region4: #{tpu_custom_call.1} parent=1 // loop_header_branch
      %16 = sbr.rel (%p14) target = $region8
    $region5: #{tpu_custom_call.1} parent=1 // loop_body
      %s18 = ssub.s32 %s13, 1
      %s19 = ssub.s32 %s13, 2
      %s20 = sadd.s32 %s13, 1
      %s21 = ssub.s32 %s13, %s20
      %p22 = scmp.eq.s32.totalorder %s21, 0
      %s24 = sadd.s32 %s23, 1
      %s25 = scalar_select %p22, %s23, %s24
      %p28 = pneg %p22
      %p29 = scmp.eq.s32.totalorder %s13, 1
      %p30 = por %p28, %p29
      %p31 = scmp.ne.s32.totalorder %s23, %s26
      %p32 = scmp.eq.s32.totalorder %s13, 0
      %p33 = por %p31, %p32
      %p34 = scmp.ne.s32.totalorder %s23, %s26
      %p35 = scmp.eq.s32.totalorder %s18, 1
      %p36 = por %p34, %p35
      %p37 = scmp.ne.s32.totalorder %s26, %s27
      %p38 = scmp.eq.s32.totalorder %s18, 0
      %p39 = por %p37, %p38
      %p40 = scmp.ne.s32.totalorder %s26, %s27
      %p41 = scmp.eq.s32.totalorder %s19, 1
      %p42 = por %p40, %p41
      %p44 = scmp.ne.s32.totalorder %s27, %s43
      %p45 = scmp.eq.s32.totalorder %s19, 0
      %p46 = por %p44, %p45
      %s47 = ssub.s32 %s13, %s20
      %p48 = scmp.eq.s32.totalorder %s47, 0
      %s50 = sadd.s32 %s49, 1
      %s51 = scalar_select %p48, %s49, %s50
      %p54 = pneg %p48
      %p55 = scmp.eq.s32.totalorder %s13, 1
      %p56 = por %p54, %p55
      %p57 = scmp.ne.s32.totalorder %s49, %s52
      %p58 = scmp.eq.s32.totalorder %s13, 0
      %p59 = por %p57, %p58
      %p60 = scmp.ne.s32.totalorder %s49, %s52
      %p61 = scmp.eq.s32.totalorder %s18, 1
      %p62 = por %p60, %p61
      %p63 = scmp.ne.s32.totalorder %s52, %s53
      %p64 = scmp.eq.s32.totalorder %s18, 0
      %p65 = por %p63, %p64
      %p66 = scmp.ne.s32.totalorder %s52, %s53
      %p67 = scmp.eq.s32.totalorder %s19, 1
      %p68 = por %p66, %p67
      %p70 = scmp.ne.s32.totalorder %s53, %s69
      %p71 = scmp.eq.s32.totalorder %s19, 0
      %p72 = por %p70, %p71
      %p73 = scmp.le.s32.totalorder 1, %s13
      %p74 = scmp.lt.s32.totalorder %s13, 3
      %p75 = pnand %p73, %p74
      %p76 = pneg %p75
      // Predicated region
      $region9: #{tpu_custom_call.1} parent=5 // pred_check
        _
      $region10: #{tpu_custom_call.1} parent=5 // pred_check_branch
        %78 = sbr.rel (%p75) target = $region12
      $region11: #{tpu_custom_call.1} parent=5 // pred_region
        %s79 = ssub.s32 %s13, 1
      $region12: #{tpu_custom_call.1} parent=5 // pred_fallthru
        _
      %p80 = scmp.lt.s32.totalorder %s13, 2
      // Predicated region
      $region13: #{tpu_custom_call.1} parent=5 // pred_check
        %p81 = pneg %p80
      $region14: #{tpu_custom_call.1} parent=5 // pred_check_branch
        %83 = sbr.rel (%p81) target = $region16
      $region15: #{tpu_custom_call.1} parent=5 // pred_region
        // Predicated region
        $region17: #{tpu_custom_call.1} parent=15 // pred_check
          %p84 = pneg %p33
        $region18: #{tpu_custom_call.1} parent=15 // pred_check_branch
          %86 = sbr.rel (%p84) target = $region20
        $region19: #{tpu_custom_call.1} parent=15 // pred_region
          %s87 = sand.u32 %s23, 1
          %s88 = scalar_lea.sflag [#allocation3], %s87
          %s89 = sand.u32 %s23, 1
          %s90 = smul.addr %s89, 1024
          %s91 = scalar_lea.vmem [#allocation2], %s90
          %s92 = smul.u32 64, %s13
          %s94 = ssub.s32 16384, 16384
          %95 = vsyncadd %s88, %s94
          %s96 = smul.addr %s92, 2
          %s97 = smul.addr %s96, 128
          %s98 = scalar_lea.hbm %s0, %s97
          %s99 = sshll.u32 %s91, 4
          %s100 = int_to_ptr.vmem [resolvable:$true] %s99
          %105 = dma.hbm_to_vmem [thread:$0]  %s98, 16384, %s100, %s88, 256, 256, 16
        $region20: #{tpu_custom_call.1} parent=15 // pred_fallthru
          _
      $region16: #{tpu_custom_call.1} parent=5 // pred_fallthru
        _
      %p106 = scmp.le.s32.totalorder 1, %s13
      %p107 = scmp.lt.s32.totalorder %s13, 3
      %p108 = pnand %p106, %p107
      %p109 = pneg %p108
      // Predicated region
      $region21: #{tpu_custom_call.1} parent=5 // pred_check
        _
      $region22: #{tpu_custom_call.1} parent=5 // pred_check_branch
        %111 = sbr.rel (%p108) target = $region24
      $region23: #{tpu_custom_call.1} parent=5 // pred_region
        %s112 = ssub.s32 %s13, 1
        %s113 = sand.u32 %s26, 1
        %s114 = scalar_lea.sflag [#allocation3], %s113
        %s115 = sand.u32 %s26, 1
        %s116 = smul.addr %s115, 1024
        %s117 = scalar_lea.vmem [#allocation2], %s116
        // Predicated region
        $region25: #{tpu_custom_call.1} parent=23 // pred_check
          %p118 = pneg %p39
        $region26: #{tpu_custom_call.1} parent=23 // pred_check_branch
          %120 = sbr.rel (%p118) target = $region28
        $region27: #{tpu_custom_call.1} parent=23 // pred_region
          %121 = dma.done %s114, 16384
        $region28: #{tpu_custom_call.1} parent=23 // pred_fallthru
          _
        %s122 = sand.u32 %s26, 1
        %s123 = scalar_lea.sflag [#allocation3], %s122
        %s124 = sand.u32 %s26, 1
        %s125 = smul.addr %s124, 1024
        %s126 = scalar_lea.vmem [#allocation2], %s125
        %p127 = pneg %p39
        %p128 = pneg %p36
        %p129 = pneg %p65
        %p130 = pneg %p62
        %s131 = sand.u32 %s52, 1
        %s132 = scalar_lea.sflag [#allocation4], %s131
        %s133 = sand.u32 %s52, 1
        %s134 = smul.addr %s133, 512
        %s135 = scalar_lea.vmem [#allocation5], %s134
        %s136 = smul.u32 64, %s18
        %s137 = smul.u32 4, %s18
        %v138 = vld [vmem:[%s117] sm:$0xff]
        %v139 = vld [vmem:[%s117 + $0x8] sm:$0xff]
        %v140 = vld [vmem:[%s117 + $0x10] sm:$0xff]
        %v141 = vld [vmem:[%s117 + $0x18] sm:$0xff]
        %v142 = vld [vmem:[%s117 + $0x20] sm:$0xff]
        %v143 = vld [vmem:[%s117 + $0x28] sm:$0xff]
        %v144 = vld [vmem:[%s117 + $0x30] sm:$0xff]
        %v145 = vld [vmem:[%s117 + $0x38] sm:$0xff]
        %v146 = vld [vmem:[%s117 + $0x40] sm:$0xff]
        %v147 = vld [vmem:[%s117 + $0x48] sm:$0xff]
        %v148 = vld [vmem:[%s117 + $0x50] sm:$0xff]
        %v149 = vld [vmem:[%s117 + $0x58] sm:$0xff]
        %v150 = vld [vmem:[%s117 + $0x60] sm:$0xff]
        %v151 = vld [vmem:[%s117 + $0x68] sm:$0xff]
        %v152 = vld [vmem:[%s117 + $0x70] sm:$0xff]
        %v153 = vld [vmem:[%s117 + $0x78] sm:$0xff]
        %v154 = vld [vmem:[%s117 + $0x80] sm:$0xff]
        %v155 = vld [vmem:[%s117 + $0x88] sm:$0xff]
        %v156 = vld [vmem:[%s117 + $0x90] sm:$0xff]
        %v157 = vld [vmem:[%s117 + $0x98] sm:$0xff]
        %v158 = vld [vmem:[%s117 + $0xa0] sm:$0xff]
        %v159 = vld [vmem:[%s117 + $0xa8] sm:$0xff]
        %v160 = vld [vmem:[%s117 + $0xb0] sm:$0xff]
        %v161 = vld [vmem:[%s117 + $0xb8] sm:$0xff]
        %v162 = vld [vmem:[%s117 + $0xc0] sm:$0xff]
        %v163 = vld [vmem:[%s117 + $0xc8] sm:$0xff]
        %v164 = vld [vmem:[%s117 + $0xd0] sm:$0xff]
        %v165 = vld [vmem:[%s117 + $0xd8] sm:$0xff]
        %v166 = vld [vmem:[%s117 + $0xe0] sm:$0xff]
        %v167 = vld [vmem:[%s117 + $0xe8] sm:$0xff]
        %v168 = vld [vmem:[%s117 + $0xf0] sm:$0xff]
        %v169 = vld [vmem:[%s117 + $0xf8] sm:$0xff]
        %v170 = vld [vmem:[%s117 + $0x100] sm:$0xff]
        %v171 = vld [vmem:[%s117 + $0x108] sm:$0xff]
        %v172 = vld [vmem:[%s117 + $0x110] sm:$0xff]
        %v173 = vld [vmem:[%s117 + $0x118] sm:$0xff]
        %v174 = vld [vmem:[%s117 + $0x120] sm:$0xff]
        %v175 = vld [vmem:[%s117 + $0x128] sm:$0xff]
        %v176 = vld [vmem:[%s117 + $0x130] sm:$0xff]
        %v177 = vld [vmem:[%s117 + $0x138] sm:$0xff]
        %v178 = vld [vmem:[%s117 + $0x140] sm:$0xff]
        %v179 = vld [vmem:[%s117 + $0x148] sm:$0xff]
        %v180 = vld [vmem:[%s117 + $0x150] sm:$0xff]
        %v181 = vld [vmem:[%s117 + $0x158] sm:$0xff]
        %v182 = vld [vmem:[%s117 + $0x160] sm:$0xff]
        %v183 = vld [vmem:[%s117 + $0x168] sm:$0xff]
        %v184 = vld [vmem:[%s117 + $0x170] sm:$0xff]
        %v185 = vld [vmem:[%s117 + $0x178] sm:$0xff]
        %v186 = vld [vmem:[%s117 + $0x180] sm:$0xff]
        %v187 = vld [vmem:[%s117 + $0x188] sm:$0xff]
        %v188 = vld [vmem:[%s117 + $0x190] sm:$0xff]
        %v189 = vld [vmem:[%s117 + $0x198] sm:$0xff]
        %v190 = vld [vmem:[%s117 + $0x1a0] sm:$0xff]
        %v191 = vld [vmem:[%s117 + $0x1a8] sm:$0xff]
        %v192 = vld [vmem:[%s117 + $0x1b0] sm:$0xff]
        %v193 = vld [vmem:[%s117 + $0x1b8] sm:$0xff]
        %v194 = vld [vmem:[%s117 + $0x1c0] sm:$0xff]
        %v195 = vld [vmem:[%s117 + $0x1c8] sm:$0xff]
        %v196 = vld [vmem:[%s117 + $0x1d0] sm:$0xff]
        %v197 = vld [vmem:[%s117 + $0x1d8] sm:$0xff]
        %v198 = vld [vmem:[%s117 + $0x1e0] sm:$0xff]
        %v199 = vld [vmem:[%s117 + $0x1e8] sm:$0xff]
        %v200 = vld [vmem:[%s117 + $0x1f0] sm:$0xff]
        %v201 = vld [vmem:[%s117 + $0x1f8] sm:$0xff]
        %v202 = vld [vmem:[%s117 + $0x200] sm:$0xff]
        %v203 = vld [vmem:[%s117 + $0x208] sm:$0xff]
        %v204 = vld [vmem:[%s117 + $0x210] sm:$0xff]
        %v205 = vld [vmem:[%s117 + $0x218] sm:$0xff]
        %v206 = vld [vmem:[%s117 + $0x220] sm:$0xff]
        %v207 = vld [vmem:[%s117 + $0x228] sm:$0xff]
        %v208 = vld [vmem:[%s117 + $0x230] sm:$0xff]
        %v209 = vld [vmem:[%s117 + $0x238] sm:$0xff]
        %v210 = vld [vmem:[%s117 + $0x240] sm:$0xff]
        %v211 = vld [vmem:[%s117 + $0x248] sm:$0xff]
        %v212 = vld [vmem:[%s117 + $0x250] sm:$0xff]
        %v213 = vld [vmem:[%s117 + $0x258] sm:$0xff]
        %v214 = vld [vmem:[%s117 + $0x260] sm:$0xff]
        %v215 = vld [vmem:[%s117 + $0x268] sm:$0xff]
        %v216 = vld [vmem:[%s117 + $0x270] sm:$0xff]
        %v217 = vld [vmem:[%s117 + $0x278] sm:$0xff]
        %v218 = vld [vmem:[%s117 + $0x280] sm:$0xff]
        %v219 = vld [vmem:[%s117 + $0x288] sm:$0xff]
        %v220 = vld [vmem:[%s117 + $0x290] sm:$0xff]
        %v221 = vld [vmem:[%s117 + $0x298] sm:$0xff]
        %v222 = vld [vmem:[%s117 + $0x2a0] sm:$0xff]
        %v223 = vld [vmem:[%s117 + $0x2a8] sm:$0xff]
        %v224 = vld [vmem:[%s117 + $0x2b0] sm:$0xff]
        %v225 = vld [vmem:[%s117 + $0x2b8] sm:$0xff]
        %v226 = vld [vmem:[%s117 + $0x2c0] sm:$0xff]
        %v227 = vld [vmem:[%s117 + $0x2c8] sm:$0xff]
        %v228 = vld [vmem:[%s117 + $0x2d0] sm:$0xff]
        %v229 = vld [vmem:[%s117 + $0x2d8] sm:$0xff]
        %v230 = vld [vmem:[%s117 + $0x2e0] sm:$0xff]
        %v231 = vld [vmem:[%s117 + $0x2e8] sm:$0xff]
        %v232 = vld [vmem:[%s117 + $0x2f0] sm:$0xff]
        %v233 = vld [vmem:[%s117 + $0x2f8] sm:$0xff]
        %v234 = vld [vmem:[%s117 + $0x300] sm:$0xff]
        %v235 = vld [vmem:[%s117 + $0x308] sm:$0xff]
        %v236 = vld [vmem:[%s117 + $0x310] sm:$0xff]
        %v237 = vld [vmem:[%s117 + $0x318] sm:$0xff]
        %v238 = vld [vmem:[%s117 + $0x320] sm:$0xff]
        %v239 = vld [vmem:[%s117 + $0x328] sm:$0xff]
        %v240 = vld [vmem:[%s117 + $0x330] sm:$0xff]
        %v241 = vld [vmem:[%s117 + $0x338] sm:$0xff]
        %v242 = vld [vmem:[%s117 + $0x340] sm:$0xff]
        %v243 = vld [vmem:[%s117 + $0x348] sm:$0xff]
        %v244 = vld [vmem:[%s117 + $0x350] sm:$0xff]
        %v245 = vld [vmem:[%s117 + $0x358] sm:$0xff]
        %v246 = vld [vmem:[%s117 + $0x360] sm:$0xff]
        %v247 = vld [vmem:[%s117 + $0x368] sm:$0xff]
        %v248 = vld [vmem:[%s117 + $0x370] sm:$0xff]
        %v249 = vld [vmem:[%s117 + $0x378] sm:$0xff]
        %v250 = vld [vmem:[%s117 + $0x380] sm:$0xff]
        %v251 = vld [vmem:[%s117 + $0x388] sm:$0xff]
        %v252 = vld [vmem:[%s117 + $0x390] sm:$0xff]
        %v253 = vld [vmem:[%s117 + $0x398] sm:$0xff]
        %v254 = vld [vmem:[%s117 + $0x3a0] sm:$0xff]
        %v255 = vld [vmem:[%s117 + $0x3a8] sm:$0xff]
        %v256 = vld [vmem:[%s117 + $0x3b0] sm:$0xff]
        %v257 = vld [vmem:[%s117 + $0x3b8] sm:$0xff]
        %v258 = vld [vmem:[%s117 + $0x3c0] sm:$0xff]
        %v259 = vld [vmem:[%s117 + $0x3c8] sm:$0xff]
        %v260 = vld [vmem:[%s117 + $0x3d0] sm:$0xff]
        %v261 = vld [vmem:[%s117 + $0x3d8] sm:$0xff]
        %v262 = vld [vmem:[%s117 + $0x3e0] sm:$0xff]
        %v263 = vld [vmem:[%s117 + $0x3e8] sm:$0xff]
        %v264 = vld [vmem:[%s117 + $0x3f0] sm:$0xff]
        %v265 = vld [vmem:[%s117 + $0x3f8] sm:$0xff]
        %v266 = vmul.f32 %v138, %v138
        %v267 = vmul.f32 %v139, %v139
        %v268 = vmul.f32 %v140, %v140
        %v269 = vmul.f32 %v141, %v141
        %v270 = vmul.f32 %v142, %v142
        %v271 = vmul.f32 %v143, %v143
        %v272 = vmul.f32 %v144, %v144
        %v273 = vmul.f32 %v145, %v145
        %v274 = vmul.f32 %v146, %v146
        %v275 = vmul.f32 %v147, %v147
        %v276 = vmul.f32 %v148, %v148
        %v277 = vmul.f32 %v149, %v149
        %v278 = vmul.f32 %v150, %v150
        %v279 = vmul.f32 %v151, %v151
        %v280 = vmul.f32 %v152, %v152
        %v281 = vmul.f32 %v153, %v153
        %v282 = vmul.f32 %v154, %v154
        %v283 = vmul.f32 %v155, %v155
        %v284 = vmul.f32 %v156, %v156
        %v285 = vmul.f32 %v157, %v157
        %v286 = vmul.f32 %v158, %v158
        %v287 = vmul.f32 %v159, %v159
        %v288 = vmul.f32 %v160, %v160
        %v289 = vmul.f32 %v161, %v161
        %v290 = vmul.f32 %v162, %v162
        %v291 = vmul.f32 %v163, %v163
        %v292 = vmul.f32 %v164, %v164
        %v293 = vmul.f32 %v165, %v165
        %v294 = vmul.f32 %v166, %v166
        %v295 = vmul.f32 %v167, %v167
        %v296 = vmul.f32 %v168, %v168
        %v297 = vmul.f32 %v169, %v169
        %v298 = vmul.f32 %v170, %v170
        %v299 = vmul.f32 %v171, %v171
        %v300 = vmul.f32 %v172, %v172
        %v301 = vmul.f32 %v173, %v173
        %v302 = vmul.f32 %v174, %v174
        %v303 = vmul.f32 %v175, %v175
        %v304 = vmul.f32 %v176, %v176
        %v305 = vmul.f32 %v177, %v177
        %v306 = vmul.f32 %v178, %v178
        %v307 = vmul.f32 %v179, %v179
        %v308 = vmul.f32 %v180, %v180
        %v309 = vmul.f32 %v181, %v181
        %v310 = vmul.f32 %v182, %v182
        %v311 = vmul.f32 %v183, %v183
        %v312 = vmul.f32 %v184, %v184
        %v313 = vmul.f32 %v185, %v185
        %v314 = vmul.f32 %v186, %v186
        %v315 = vmul.f32 %v187, %v187
        %v316 = vmul.f32 %v188, %v188
        %v317 = vmul.f32 %v189, %v189
        %v318 = vmul.f32 %v190, %v190
        %v319 = vmul.f32 %v191, %v191
        %v320 = vmul.f32 %v192, %v192
        %v321 = vmul.f32 %v193, %v193
        %v322 = vmul.f32 %v194, %v194
        %v323 = vmul.f32 %v195, %v195
        %v324 = vmul.f32 %v196, %v196
        %v325 = vmul.f32 %v197, %v197
        %v326 = vmul.f32 %v198, %v198
        %v327 = vmul.f32 %v199, %v199
        %v328 = vmul.f32 %v200, %v200
        %v329 = vmul.f32 %v201, %v201
        %v330 = vmul.f32 %v202, %v202
        %v331 = vmul.f32 %v203, %v203
        %v332 = vmul.f32 %v204, %v204
        %v333 = vmul.f32 %v205, %v205
        %v334 = vmul.f32 %v206, %v206
        %v335 = vmul.f32 %v207, %v207
        %v336 = vmul.f32 %v208, %v208
        %v337 = vmul.f32 %v209, %v209
        %v338 = vmul.f32 %v210, %v210
        %v339 = vmul.f32 %v211, %v211
        %v340 = vmul.f32 %v212, %v212
        %v341 = vmul.f32 %v213, %v213
        %v342 = vmul.f32 %v214, %v214
        %v343 = vmul.f32 %v215, %v215
        %v344 = vmul.f32 %v216, %v216
        %v345 = vmul.f32 %v217, %v217
        %v346 = vmul.f32 %v218, %v218
        %v347 = vmul.f32 %v219, %v219
        %v348 = vmul.f32 %v220, %v220
        %v349 = vmul.f32 %v221, %v221
        %v350 = vmul.f32 %v222, %v222
        %v351 = vmul.f32 %v223, %v223
        %v352 = vmul.f32 %v224, %v224
        %v353 = vmul.f32 %v225, %v225
        %v354 = vmul.f32 %v226, %v226
        %v355 = vmul.f32 %v227, %v227
        %v356 = vmul.f32 %v228, %v228
        %v357 = vmul.f32 %v229, %v229
        %v358 = vmul.f32 %v230, %v230
        %v359 = vmul.f32 %v231, %v231
        %v360 = vmul.f32 %v232, %v232
        %v361 = vmul.f32 %v233, %v233
        %v362 = vmul.f32 %v234, %v234
        %v363 = vmul.f32 %v235, %v235
        %v364 = vmul.f32 %v236, %v236
        %v365 = vmul.f32 %v237, %v237
        %v366 = vmul.f32 %v238, %v238
        %v367 = vmul.f32 %v239, %v239
        %v368 = vmul.f32 %v240, %v240
        %v369 = vmul.f32 %v241, %v241
        %v370 = vmul.f32 %v242, %v242
        %v371 = vmul.f32 %v243, %v243
        %v372 = vmul.f32 %v244, %v244
        %v373 = vmul.f32 %v245, %v245
        %v374 = vmul.f32 %v246, %v246
        %v375 = vmul.f32 %v247, %v247
        %v376 = vmul.f32 %v248, %v248
        %v377 = vmul.f32 %v249, %v249
        %v378 = vmul.f32 %v250, %v250
        %v379 = vmul.f32 %v251, %v251
        %v380 = vmul.f32 %v252, %v252
        %v381 = vmul.f32 %v253, %v253
        %v382 = vmul.f32 %v254, %v254
        %v383 = vmul.f32 %v255, %v255
        %v384 = vmul.f32 %v256, %v256
        %v385 = vmul.f32 %v257, %v257
        %v386 = vmul.f32 %v258, %v258
        %v387 = vmul.f32 %v259, %v259
        %v388 = vmul.f32 %v260, %v260
        %v389 = vmul.f32 %v261, %v261
        %v390 = vmul.f32 %v262, %v262
        %v391 = vmul.f32 %v263, %v263
        %v392 = vmul.f32 %v264, %v264
        %v393 = vmul.f32 %v265, %v265
        %v394 = vadd.f32 %v266, %v267
        %395 = vadd.xlane.f32.xlu0 %v394
        %v396 = vpop.xlane.xlu0 %395
        %v397 = vadd.f32 %v268, %v269
        %398 = vadd.xlane.f32.xlu0 %v397
        %v399 = vpop.xlane.xlu0 %398
        %v400 = vadd.f32 %v270, %v271
        %401 = vadd.xlane.f32.xlu0 %v400
        %v402 = vpop.xlane.xlu0 %401
        %v403 = vadd.f32 %v272, %v273
        %404 = vadd.xlane.f32.xlu0 %v403
        %v405 = vpop.xlane.xlu0 %404
        %v406 = vadd.f32 %v274, %v275
        %407 = vadd.xlane.f32.xlu0 %v406
        %v408 = vpop.xlane.xlu0 %407
        %v409 = vadd.f32 %v276, %v277
        %410 = vadd.xlane.f32.xlu0 %v409
        %v411 = vpop.xlane.xlu0 %410
        %v412 = vadd.f32 %v278, %v279
        %413 = vadd.xlane.f32.xlu0 %v412
        %v414 = vpop.xlane.xlu0 %413
        %v415 = vadd.f32 %v280, %v281
        %416 = vadd.xlane.f32.xlu0 %v415
        %v417 = vpop.xlane.xlu0 %416
        %v418 = vadd.f32 %v282, %v283
        %419 = vadd.xlane.f32.xlu0 %v418
        %v420 = vpop.xlane.xlu0 %419
        %v421 = vadd.f32 %v284, %v285
        %422 = vadd.xlane.f32.xlu0 %v421
        %v423 = vpop.xlane.xlu0 %422
        %v424 = vadd.f32 %v286, %v287
        %425 = vadd.xlane.f32.xlu0 %v424
        %v426 = vpop.xlane.xlu0 %425
        %v427 = vadd.f32 %v288, %v289
        %428 = vadd.xlane.f32.xlu0 %v427
        %v429 = vpop.xlane.xlu0 %428
        %v430 = vadd.f32 %v290, %v291
        %431 = vadd.xlane.f32.xlu0 %v430
        %v432 = vpop.xlane.xlu0 %431
        %v433 = vadd.f32 %v292, %v293
        %434 = vadd.xlane.f32.xlu0 %v433
        %v435 = vpop.xlane.xlu0 %434
        %v436 = vadd.f32 %v294, %v295
        %437 = vadd.xlane.f32.xlu0 %v436
        %v438 = vpop.xlane.xlu0 %437
        %v439 = vadd.f32 %v296, %v297
        %440 = vadd.xlane.f32.xlu0 %v439
        %v441 = vpop.xlane.xlu0 %440
        %v442 = vadd.f32 %v298, %v299
        %443 = vadd.xlane.f32.xlu0 %v442
        %v444 = vpop.xlane.xlu0 %443
        %v445 = vadd.f32 %v300, %v301
        %446 = vadd.xlane.f32.xlu0 %v445
        %v447 = vpop.xlane.xlu0 %446
        %v448 = vadd.f32 %v302, %v303
        %449 = vadd.xlane.f32.xlu0 %v448
        %v450 = vpop.xlane.xlu0 %449
        %v451 = vadd.f32 %v304, %v305
        %452 = vadd.xlane.f32.xlu0 %v451
        %v453 = vpop.xlane.xlu0 %452
        %v454 = vadd.f32 %v306, %v307
        %455 = vadd.xlane.f32.xlu0 %v454
        %v456 = vpop.xlane.xlu0 %455
        %v457 = vadd.f32 %v308, %v309
        %458 = vadd.xlane.f32.xlu0 %v457
        %v459 = vpop.xlane.xlu0 %458
        %v460 = vadd.f32 %v310, %v311
        %461 = vadd.xlane.f32.xlu0 %v460
        %v462 = vpop.xlane.xlu0 %461
        %v463 = vadd.f32 %v312, %v313
        %464 = vadd.xlane.f32.xlu0 %v463
        %v465 = vpop.xlane.xlu0 %464
        %v466 = vadd.f32 %v314, %v315
        %467 = vadd.xlane.f32.xlu0 %v466
        %v468 = vpop.xlane.xlu0 %467
        %v469 = vadd.f32 %v316, %v317
        %470 = vadd.xlane.f32.xlu0 %v469
        %v471 = vpop.xlane.xlu0 %470
        %v472 = vadd.f32 %v318, %v319
        %473 = vadd.xlane.f32.xlu0 %v472
        %v474 = vpop.xlane.xlu0 %473
        %v475 = vadd.f32 %v320, %v321
        %476 = vadd.xlane.f32.xlu0 %v475
        %v477 = vpop.xlane.xlu0 %476
        %v478 = vadd.f32 %v322, %v323
        %479 = vadd.xlane.f32.xlu0 %v478
        %v480 = vpop.xlane.xlu0 %479
        %v481 = vadd.f32 %v324, %v325
        %482 = vadd.xlane.f32.xlu0 %v481
        %v483 = vpop.xlane.xlu0 %482
        %v484 = vadd.f32 %v326, %v327
        %485 = vadd.xlane.f32.xlu0 %v484
        %v486 = vpop.xlane.xlu0 %485
        %v487 = vadd.f32 %v328, %v329
        %488 = vadd.xlane.f32.xlu0 %v487
        %v489 = vpop.xlane.xlu0 %488
        %v490 = vadd.f32 %v330, %v331
        %491 = vadd.xlane.f32.xlu0 %v490
        %v492 = vpop.xlane.xlu0 %491
        %v493 = vadd.f32 %v332, %v333
        %494 = vadd.xlane.f32.xlu0 %v493
        %v495 = vpop.xlane.xlu0 %494
        %v496 = vadd.f32 %v334, %v335
        %497 = vadd.xlane.f32.xlu0 %v496
        %v498 = vpop.xlane.xlu0 %497
        %v499 = vadd.f32 %v336, %v337
        %500 = vadd.xlane.f32.xlu0 %v499
        %v501 = vpop.xlane.xlu0 %500
        %v502 = vadd.f32 %v338, %v339
        %503 = vadd.xlane.f32.xlu0 %v502
        %v504 = vpop.xlane.xlu0 %503
        %v505 = vadd.f32 %v340, %v341
        %506 = vadd.xlane.f32.xlu0 %v505
        %v507 = vpop.xlane.xlu0 %506
        %v508 = vadd.f32 %v342, %v343
        %509 = vadd.xlane.f32.xlu0 %v508
        %v510 = vpop.xlane.xlu0 %509
        %v511 = vadd.f32 %v344, %v345
        %512 = vadd.xlane.f32.xlu0 %v511
        %v513 = vpop.xlane.xlu0 %512
        %v514 = vadd.f32 %v346, %v347
        %515 = vadd.xlane.f32.xlu0 %v514
        %v516 = vpop.xlane.xlu0 %515
        %v517 = vadd.f32 %v348, %v349
        %518 = vadd.xlane.f32.xlu0 %v517
        %v519 = vpop.xlane.xlu0 %518
        %v520 = vadd.f32 %v350, %v351
        %521 = vadd.xlane.f32.xlu0 %v520
        %v522 = vpop.xlane.xlu0 %521
        %v523 = vadd.f32 %v352, %v353
        %524 = vadd.xlane.f32.xlu0 %v523
        %v525 = vpop.xlane.xlu0 %524
        %v526 = vadd.f32 %v354, %v355
        %527 = vadd.xlane.f32.xlu0 %v526
        %v528 = vpop.xlane.xlu0 %527
        %v529 = vadd.f32 %v356, %v357
        %530 = vadd.xlane.f32.xlu0 %v529
        %v531 = vpop.xlane.xlu0 %530
        %v532 = vadd.f32 %v358, %v359
        %533 = vadd.xlane.f32.xlu0 %v532
        %v534 = vpop.xlane.xlu0 %533
        %v535 = vadd.f32 %v360, %v361
        %536 = vadd.xlane.f32.xlu0 %v535
        %v537 = vpop.xlane.xlu0 %536
        %v538 = vadd.f32 %v362, %v363
        %539 = vadd.xlane.f32.xlu0 %v538
        %v540 = vpop.xlane.xlu0 %539
        %v541 = vadd.f32 %v364, %v365
        %542 = vadd.xlane.f32.xlu0 %v541
        %v543 = vpop.xlane.xlu0 %542
        %v544 = vadd.f32 %v366, %v367
        %545 = vadd.xlane.f32.xlu0 %v544
        %v546 = vpop.xlane.xlu0 %545
        %v547 = vadd.f32 %v368, %v369
        %548 = vadd.xlane.f32.xlu0 %v547
        %v549 = vpop.xlane.xlu0 %548
        %v550 = vadd.f32 %v370, %v371
        %551 = vadd.xlane.f32.xlu0 %v550
        %v552 = vpop.xlane.xlu0 %551
        %v553 = vadd.f32 %v372, %v373
        %554 = vadd.xlane.f32.xlu0 %v553
        %v555 = vpop.xlane.xlu0 %554
        %v556 = vadd.f32 %v374, %v375
        %557 = vadd.xlane.f32.xlu0 %v556
        %v558 = vpop.xlane.xlu0 %557
        %v559 = vadd.f32 %v376, %v377
        %560 = vadd.xlane.f32.xlu0 %v559
        %v561 = vpop.xlane.xlu0 %560
        %v562 = vadd.f32 %v378, %v379
        %563 = vadd.xlane.f32.xlu0 %v562
        %v564 = vpop.xlane.xlu0 %563
        %v565 = vadd.f32 %v380, %v381
        %566 = vadd.xlane.f32.xlu0 %v565
        %v567 = vpop.xlane.xlu0 %566
        %v568 = vadd.f32 %v382, %v383
        %569 = vadd.xlane.f32.xlu0 %v568
        %v570 = vpop.xlane.xlu0 %569
        %v571 = vadd.f32 %v384, %v385
        %572 = vadd.xlane.f32.xlu0 %v571
        %v573 = vpop.xlane.xlu0 %572
        %v574 = vadd.f32 %v386, %v387
        %575 = vadd.xlane.f32.xlu0 %v574
        %v576 = vpop.xlane.xlu0 %575
        %v577 = vadd.f32 %v388, %v389
        %578 = vadd.xlane.f32.xlu0 %v577
        %v579 = vpop.xlane.xlu0 %578
        %v580 = vadd.f32 %v390, %v391
        %581 = vadd.xlane.f32.xlu0 %v580
        %v582 = vpop.xlane.xlu0 %581
        %v583 = vadd.f32 %v392, %v393
        %584 = vadd.xlane.f32.xlu0 %v583
        %v585 = vpop.xlane.xlu0 %584
        %v586 = vadd.f32 %v396, 1e-12
        %v587 = vadd.f32 %v399, 1e-12
        %v588 = vadd.f32 %v402, 1e-12
        %v589 = vadd.f32 %v405, 1e-12
        %v590 = vadd.f32 %v408, 1e-12
        %v591 = vadd.f32 %v411, 1e-12
        %v592 = vadd.f32 %v414, 1e-12
        %v593 = vadd.f32 %v417, 1e-12
        %v594 = vadd.f32 %v420, 1e-12
        %v595 = vadd.f32 %v423, 1e-12
        %v596 = vadd.f32 %v426, 1e-12
        %v597 = vadd.f32 %v429, 1e-12
        %v598 = vadd.f32 %v432, 1e-12
        %v599 = vadd.f32 %v435, 1e-12
        %v600 = vadd.f32 %v438, 1e-12
        %v601 = vadd.f32 %v441, 1e-12
        %v602 = vadd.f32 %v444, 1e-12
        %v603 = vadd.f32 %v447, 1e-12
        %v604 = vadd.f32 %v450, 1e-12
        %v605 = vadd.f32 %v453, 1e-12
        %v606 = vadd.f32 %v456, 1e-12
        %v607 = vadd.f32 %v459, 1e-12
        %v608 = vadd.f32 %v462, 1e-12
        %v609 = vadd.f32 %v465, 1e-12
        %v610 = vadd.f32 %v468, 1e-12
        %v611 = vadd.f32 %v471, 1e-12
        %v612 = vadd.f32 %v474, 1e-12
        %v613 = vadd.f32 %v477, 1e-12
        %v614 = vadd.f32 %v480, 1e-12
        %v615 = vadd.f32 %v483, 1e-12
        %v616 = vadd.f32 %v486, 1e-12
        %v617 = vadd.f32 %v489, 1e-12
        %v618 = vadd.f32 %v492, 1e-12
        %v619 = vadd.f32 %v495, 1e-12
        %v620 = vadd.f32 %v498, 1e-12
        %v621 = vadd.f32 %v501, 1e-12
        %v622 = vadd.f32 %v504, 1e-12
        %v623 = vadd.f32 %v507, 1e-12
        %v624 = vadd.f32 %v510, 1e-12
        %v625 = vadd.f32 %v513, 1e-12
        %v626 = vadd.f32 %v516, 1e-12
        %v627 = vadd.f32 %v519, 1e-12
        %v628 = vadd.f32 %v522, 1e-12
        %v629 = vadd.f32 %v525, 1e-12
        %v630 = vadd.f32 %v528, 1e-12
        %v631 = vadd.f32 %v531, 1e-12
        %v632 = vadd.f32 %v534, 1e-12
        %v633 = vadd.f32 %v537, 1e-12
        %v634 = vadd.f32 %v540, 1e-12
        %v635 = vadd.f32 %v543, 1e-12
        %v636 = vadd.f32 %v546, 1e-12
        %v637 = vadd.f32 %v549, 1e-12
        %v638 = vadd.f32 %v552, 1e-12
        %v639 = vadd.f32 %v555, 1e-12
        %v640 = vadd.f32 %v558, 1e-12
        %v641 = vadd.f32 %v561, 1e-12
        %v642 = vadd.f32 %v564, 1e-12
        %v643 = vadd.f32 %v567, 1e-12
        %v644 = vadd.f32 %v570, 1e-12
        %v645 = vadd.f32 %v573, 1e-12
        %v646 = vadd.f32 %v576, 1e-12
        %v647 = vadd.f32 %v579, 1e-12
        %v648 = vadd.f32 %v582, 1e-12
        %v649 = vadd.f32 %v585, 1e-12
        %v650 = vrsqrt.pop %v586
        %v651 = vrsqrt.pop %v587
        %v652 = vrsqrt.pop %v588
        %v653 = vrsqrt.pop %v589
        %v654 = vrsqrt.pop %v590
        %v655 = vrsqrt.pop %v591
        %v656 = vrsqrt.pop %v592
        %v657 = vrsqrt.pop %v593
        %v658 = vrsqrt.pop %v594
        %v659 = vrsqrt.pop %v595
        %v660 = vrsqrt.pop %v596
        %v661 = vrsqrt.pop %v597
        %v662 = vrsqrt.pop %v598
        %v663 = vrsqrt.pop %v599
        %v664 = vrsqrt.pop %v600
        %v665 = vrsqrt.pop %v601
        %v666 = vrsqrt.pop %v602
        %v667 = vrsqrt.pop %v603
        %v668 = vrsqrt.pop %v604
        %v669 = vrsqrt.pop %v605
        %v670 = vrsqrt.pop %v606
        %v671 = vrsqrt.pop %v607
        %v672 = vrsqrt.pop %v608
        %v673 = vrsqrt.pop %v609
        %v674 = vrsqrt.pop %v610
        %v675 = vrsqrt.pop %v611
        %v676 = vrsqrt.pop %v612
        %v677 = vrsqrt.pop %v613
        %v678 = vrsqrt.pop %v614
        %v679 = vrsqrt.pop %v615
        %v680 = vrsqrt.pop %v616
        %v681 = vrsqrt.pop %v617
        %v682 = vrsqrt.pop %v618
        %v683 = vrsqrt.pop %v619
        %v684 = vrsqrt.pop %v620
        %v685 = vrsqrt.pop %v621
        %v686 = vrsqrt.pop %v622
        %v687 = vrsqrt.pop %v623
        %v688 = vrsqrt.pop %v624
        %v689 = vrsqrt.pop %v625
        %v690 = vrsqrt.pop %v626
        %v691 = vrsqrt.pop %v627
        %v692 = vrsqrt.pop %v628
        %v693 = vrsqrt.pop %v629
        %v694 = vrsqrt.pop %v630
        %v695 = vrsqrt.pop %v631
        %v696 = vrsqrt.pop %v632
        %v697 = vrsqrt.pop %v633
        %v698 = vrsqrt.pop %v634
        %v699 = vrsqrt.pop %v635
        %v700 = vrsqrt.pop %v636
        %v701 = vrsqrt.pop %v637
        %v702 = vrsqrt.pop %v638
        %v703 = vrsqrt.pop %v639
        %v704 = vrsqrt.pop %v640
        %v705 = vrsqrt.pop %v641
        %v706 = vrsqrt.pop %v642
        %v707 = vrsqrt.pop %v643
        %v708 = vrsqrt.pop %v644
        %v709 = vrsqrt.pop %v645
        %v710 = vrsqrt.pop %v646
        %v711 = vrsqrt.pop %v647
        %v712 = vrsqrt.pop %v648
        %v713 = vrsqrt.pop %v649
        %v714 = vmul.f32 %v138, %v650
        %v715 = vmul.f32 %v139, %v650
        %v716 = vmul.f32 %v140, %v651
        %v717 = vmul.f32 %v141, %v651
        %v718 = vmul.f32 %v142, %v652
        %v719 = vmul.f32 %v143, %v652
        %v720 = vmul.f32 %v144, %v653
        %v721 = vmul.f32 %v145, %v653
        %v722 = vmul.f32 %v146, %v654
        %v723 = vmul.f32 %v147, %v654
        %v724 = vmul.f32 %v148, %v655
        %v725 = vmul.f32 %v149, %v655
        %v726 = vmul.f32 %v150, %v656
        %v727 = vmul.f32 %v151, %v656
        %v728 = vmul.f32 %v152, %v657
        %v729 = vmul.f32 %v153, %v657
        %v730 = vmul.f32 %v154, %v658
        %v731 = vmul.f32 %v155, %v658
        %v732 = vmul.f32 %v156, %v659
        %v733 = vmul.f32 %v157, %v659
        %v734 = vmul.f32 %v158, %v660
        %v735 = vmul.f32 %v159, %v660
        %v736 = vmul.f32 %v160, %v661
        %v737 = vmul.f32 %v161, %v661
        %v738 = vmul.f32 %v162, %v662
        %v739 = vmul.f32 %v163, %v662
        %v740 = vmul.f32 %v164, %v663
        %v741 = vmul.f32 %v165, %v663
        %v742 = vmul.f32 %v166, %v664
        %v743 = vmul.f32 %v167, %v664
        %v744 = vmul.f32 %v168, %v665
        %v745 = vmul.f32 %v169, %v665
        %v746 = vmul.f32 %v170, %v666
        %v747 = vmul.f32 %v171, %v666
        %v748 = vmul.f32 %v172, %v667
        %v749 = vmul.f32 %v173, %v667
        %v750 = vmul.f32 %v174, %v668
        %v751 = vmul.f32 %v175, %v668
        %v752 = vmul.f32 %v176, %v669
        %v753 = vmul.f32 %v177, %v669
        %v754 = vmul.f32 %v178, %v670
        %v755 = vmul.f32 %v179, %v670
        %v756 = vmul.f32 %v180, %v671
        %v757 = vmul.f32 %v181, %v671
        %v758 = vmul.f32 %v182, %v672
        %v759 = vmul.f32 %v183, %v672
        %v760 = vmul.f32 %v184, %v673
        %v761 = vmul.f32 %v185, %v673
        %v762 = vmul.f32 %v186, %v674
        %v763 = vmul.f32 %v187, %v674
        %v764 = vmul.f32 %v188, %v675
        %v765 = vmul.f32 %v189, %v675
        %v766 = vmul.f32 %v190, %v676
        %v767 = vmul.f32 %v191, %v676
        %v768 = vmul.f32 %v192, %v677
        %v769 = vmul.f32 %v193, %v677
        %v770 = vmul.f32 %v194, %v678
        %v771 = vmul.f32 %v195, %v678
        %v772 = vmul.f32 %v196, %v679
        %v773 = vmul.f32 %v197, %v679
        %v774 = vmul.f32 %v198, %v680
        %v775 = vmul.f32 %v199, %v680
        %v776 = vmul.f32 %v200, %v681
        %v777 = vmul.f32 %v201, %v681
        %v778 = vmul.f32 %v202, %v682
        %v779 = vmul.f32 %v203, %v682
        %v780 = vmul.f32 %v204, %v683
        %v781 = vmul.f32 %v205, %v683
        %v782 = vmul.f32 %v206, %v684
        %v783 = vmul.f32 %v207, %v684
        %v784 = vmul.f32 %v208, %v685
        %v785 = vmul.f32 %v209, %v685
        %v786 = vmul.f32 %v210, %v686
        %v787 = vmul.f32 %v211, %v686
        %v788 = vmul.f32 %v212, %v687
        %v789 = vmul.f32 %v213, %v687
        %v790 = vmul.f32 %v214, %v688
        %v791 = vmul.f32 %v215, %v688
        %v792 = vmul.f32 %v216, %v689
        %v793 = vmul.f32 %v217, %v689
        %v794 = vmul.f32 %v218, %v690
        %v795 = vmul.f32 %v219, %v690
        %v796 = vmul.f32 %v220, %v691
        %v797 = vmul.f32 %v221, %v691
        %v798 = vmul.f32 %v222, %v692
        %v799 = vmul.f32 %v223, %v692
        %v800 = vmul.f32 %v224, %v693
        %v801 = vmul.f32 %v225, %v693
        %v802 = vmul.f32 %v226, %v694
        %v803 = vmul.f32 %v227, %v694
        %v804 = vmul.f32 %v228, %v695
        %v805 = vmul.f32 %v229, %v695
        %v806 = vmul.f32 %v230, %v696
        %v807 = vmul.f32 %v231, %v696
        %v808 = vmul.f32 %v232, %v697
        %v809 = vmul.f32 %v233, %v697
        %v810 = vmul.f32 %v234, %v698
        %v811 = vmul.f32 %v235, %v698
        %v812 = vmul.f32 %v236, %v699
        %v813 = vmul.f32 %v237, %v699
        %v814 = vmul.f32 %v238, %v700
        %v815 = vmul.f32 %v239, %v700
        %v816 = vmul.f32 %v240, %v701
        %v817 = vmul.f32 %v241, %v701
        %v818 = vmul.f32 %v242, %v702
        %v819 = vmul.f32 %v243, %v702
        %v820 = vmul.f32 %v244, %v703
        %v821 = vmul.f32 %v245, %v703
        %v822 = vmul.f32 %v246, %v704
        %v823 = vmul.f32 %v247, %v704
        %v824 = vmul.f32 %v248, %v705
        %v825 = vmul.f32 %v249, %v705
        %v826 = vmul.f32 %v250, %v706
        %v827 = vmul.f32 %v251, %v706
        %v828 = vmul.f32 %v252, %v707
        %v829 = vmul.f32 %v253, %v707
        %v830 = vmul.f32 %v254, %v708
        %v831 = vmul.f32 %v255, %v708
        %v832 = vmul.f32 %v256, %v709
        %v833 = vmul.f32 %v257, %v709
        %v834 = vmul.f32 %v258, %v710
        %v835 = vmul.f32 %v259, %v710
        %v836 = vmul.f32 %v260, %v711
        %v837 = vmul.f32 %v261, %v711
        %v838 = vmul.f32 %v262, %v712
        %v839 = vmul.f32 %v263, %v712
        %v840 = vmul.f32 %v264, %v713
        %v841 = vmul.f32 %v265, %v713
        %842 = vxpose.xlu0.b32.start [1/16] %v714, 128
        %843 = vxpose.xlu0.b32.cont [2/16] %v716, 128
        %844 = vxpose.xlu0.b32.cont [3/16] %v718, 128
        %845 = vxpose.xlu0.b32.cont [4/16] %v720, 128
        %846 = vxpose.xlu0.b32.cont [5/16] %v722, 128
        %847 = vxpose.xlu0.b32.cont [6/16] %v724, 128
        %848 = vxpose.xlu0.b32.cont [7/16] %v726, 128
        %849 = vxpose.xlu0.b32.cont [8/16] %v728, 128
        %850 = vxpose.xlu0.b32.cont [9/16] %v730, 128
        %851 = vxpose.xlu0.b32.cont [10/16] %v732, 128
        %852 = vxpose.xlu0.b32.cont [11/16] %v734, 128
        %853 = vxpose.xlu0.b32.cont [12/16] %v736, 128
        %854 = vxpose.xlu0.b32.cont [13/16] %v738, 128
        %855 = vxpose.xlu0.b32.cont [14/16] %v740, 128
        %856 = vxpose.xlu0.b32.cont [15/16] %v742, 128
        %857 = vxpose.xlu0.b32.end [16/16] %v744, 128
        %v858 = vpop.trf.xlu0
        %v859 = vpop.trf.xlu0
        %v860 = vpop.trf.xlu0
        %v861 = vpop.trf.xlu0
        %v862 = vpop.trf.xlu0
        %v863 = vpop.trf.xlu0
        %v864 = vpop.trf.xlu0
        %v865 = vpop.trf.xlu0
        %v866 = vpop.trf.xlu0
        %v867 = vpop.trf.xlu0
        %v868 = vpop.trf.xlu0
        %v869 = vpop.trf.xlu0
        %v870 = vpop.trf.xlu0
        %v871 = vpop.trf.xlu0
        %v872 = vpop.trf.xlu0
        %v873 = vpop.trf.xlu0
        %874 = vxpose.xlu0.b32.start [1/16] %v715, 128
        %875 = vxpose.xlu0.b32.cont [2/16] %v717, 128
        %876 = vxpose.xlu0.b32.cont [3/16] %v719, 128
        %877 = vxpose.xlu0.b32.cont [4/16] %v721, 128
        %878 = vxpose.xlu0.b32.cont [5/16] %v723, 128
        %879 = vxpose.xlu0.b32.cont [6/16] %v725, 128
        %880 = vxpose.xlu0.b32.cont [7/16] %v727, 128
        %881 = vxpose.xlu0.b32.cont [8/16] %v729, 128
        %882 = vxpose.xlu0.b32.cont [9/16] %v731, 128
        %883 = vxpose.xlu0.b32.cont [10/16] %v733, 128
        %884 = vxpose.xlu0.b32.cont [11/16] %v735, 128
        %885 = vxpose.xlu0.b32.cont [12/16] %v737, 128
        %886 = vxpose.xlu0.b32.cont [13/16] %v739, 128
        %887 = vxpose.xlu0.b32.cont [14/16] %v741, 128
        %888 = vxpose.xlu0.b32.cont [15/16] %v743, 128
        %889 = vxpose.xlu0.b32.end [16/16] %v745, 128
        %v890 = vpop.trf.xlu0
        %v891 = vpop.trf.xlu0
        %v892 = vpop.trf.xlu0
        %v893 = vpop.trf.xlu0
        %v894 = vpop.trf.xlu0
        %v895 = vpop.trf.xlu0
        %v896 = vpop.trf.xlu0
        %v897 = vpop.trf.xlu0
        %v898 = vpop.trf.xlu0
        %v899 = vpop.trf.xlu0
        %v900 = vpop.trf.xlu0
        %v901 = vpop.trf.xlu0
        %v902 = vpop.trf.xlu0
        %v903 = vpop.trf.xlu0
        %v904 = vpop.trf.xlu0
        %v905 = vpop.trf.xlu0
        %906 = vxpose.xlu0.b32.start [1/16] %v746, 128
        %907 = vxpose.xlu0.b32.cont [2/16] %v748, 128
        %908 = vxpose.xlu0.b32.cont [3/16] %v750, 128
        %909 = vxpose.xlu0.b32.cont [4/16] %v752, 128
        %910 = vxpose.xlu0.b32.cont [5/16] %v754, 128
        %911 = vxpose.xlu0.b32.cont [6/16] %v756, 128
        %912 = vxpose.xlu0.b32.cont [7/16] %v758, 128
        %913 = vxpose.xlu0.b32.cont [8/16] %v760, 128
        %914 = vxpose.xlu0.b32.cont [9/16] %v762, 128
        %915 = vxpose.xlu0.b32.cont [10/16] %v764, 128
        %916 = vxpose.xlu0.b32.cont [11/16] %v766, 128
        %917 = vxpose.xlu0.b32.cont [12/16] %v768, 128
        %918 = vxpose.xlu0.b32.cont [13/16] %v770, 128
        %919 = vxpose.xlu0.b32.cont [14/16] %v772, 128
        %920 = vxpose.xlu0.b32.cont [15/16] %v774, 128
        %921 = vxpose.xlu0.b32.end [16/16] %v776, 128
        %v922 = vpop.trf.xlu0
        %v923 = vpop.trf.xlu0
        %v924 = vpop.trf.xlu0
        %v925 = vpop.trf.xlu0
        %v926 = vpop.trf.xlu0
        %v927 = vpop.trf.xlu0
        %v928 = vpop.trf.xlu0
        %v929 = vpop.trf.xlu0
        %v930 = vpop.trf.xlu0
        %v931 = vpop.trf.xlu0
        %v932 = vpop.trf.xlu0
        %v933 = vpop.trf.xlu0
        %v934 = vpop.trf.xlu0
        %v935 = vpop.trf.xlu0
        %v936 = vpop.trf.xlu0
        %v937 = vpop.trf.xlu0
        %938 = vxpose.xlu0.b32.start [1/16] %v747, 128
        %939 = vxpose.xlu0.b32.cont [2/16] %v749, 128
        %940 = vxpose.xlu0.b32.cont [3/16] %v751, 128
        %941 = vxpose.xlu0.b32.cont [4/16] %v753, 128
        %942 = vxpose.xlu0.b32.cont [5/16] %v755, 128
        %943 = vxpose.xlu0.b32.cont [6/16] %v757, 128
        %944 = vxpose.xlu0.b32.cont [7/16] %v759, 128
        %945 = vxpose.xlu0.b32.cont [8/16] %v761, 128
        %946 = vxpose.xlu0.b32.cont [9/16] %v763, 128
        %947 = vxpose.xlu0.b32.cont [10/16] %v765, 128
        %948 = vxpose.xlu0.b32.cont [11/16] %v767, 128
        %949 = vxpose.xlu0.b32.cont [12/16] %v769, 128
        %950 = vxpose.xlu0.b32.cont [13/16] %v771, 128
        %951 = vxpose.xlu0.b32.cont [14/16] %v773, 128
        %952 = vxpose.xlu0.b32.cont [15/16] %v775, 128
        %953 = vxpose.xlu0.b32.end [16/16] %v777, 128
        %v954 = vpop.trf.xlu0
        %v955 = vpop.trf.xlu0
        %v956 = vpop.trf.xlu0
        %v957 = vpop.trf.xlu0
        %v958 = vpop.trf.xlu0
        %v959 = vpop.trf.xlu0
        %v960 = vpop.trf.xlu0
        %v961 = vpop.trf.xlu0
        %v962 = vpop.trf.xlu0
        %v963 = vpop.trf.xlu0
        %v964 = vpop.trf.xlu0
        %v965 = vpop.trf.xlu0
        %v966 = vpop.trf.xlu0
        %v967 = vpop.trf.xlu0
        %v968 = vpop.trf.xlu0
        %v969 = vpop.trf.xlu0
        %970 = vxpose.xlu0.b32.start [1/16] %v778, 128
        %971 = vxpose.xlu0.b32.cont [2/16] %v780, 128
        %972 = vxpose.xlu0.b32.cont [3/16] %v782, 128
        %973 = vxpose.xlu0.b32.cont [4/16] %v784, 128
        %974 = vxpose.xlu0.b32.cont [5/16] %v786, 128
        %975 = vxpose.xlu0.b32.cont [6/16] %v788, 128
        %976 = vxpose.xlu0.b32.cont [7/16] %v790, 128
        %977 = vxpose.xlu0.b32.cont [8/16] %v792, 128
        %978 = vxpose.xlu0.b32.cont [9/16] %v794, 128
        %979 = vxpose.xlu0.b32.cont [10/16] %v796, 128
        %980 = vxpose.xlu0.b32.cont [11/16] %v798, 128
        %981 = vxpose.xlu0.b32.cont [12/16] %v800, 128
        %982 = vxpose.xlu0.b32.cont [13/16] %v802, 128
        %983 = vxpose.xlu0.b32.cont [14/16] %v804, 128
        %984 = vxpose.xlu0.b32.cont [15/16] %v806, 128
        %985 = vxpose.xlu0.b32.end [16/16] %v808, 128
        %v986 = vpop.trf.xlu0
        %v987 = vpop.trf.xlu0
        %v988 = vpop.trf.xlu0
        %v989 = vpop.trf.xlu0
        %v990 = vpop.trf.xlu0
        %v991 = vpop.trf.xlu0
        %v992 = vpop.trf.xlu0
        %v993 = vpop.trf.xlu0
        %v994 = vpop.trf.xlu0
        %v995 = vpop.trf.xlu0
        %v996 = vpop.trf.xlu0
        %v997 = vpop.trf.xlu0
        %v998 = vpop.trf.xlu0
        %v999 = vpop.trf.xlu0
        %v1000 = vpop.trf.xlu0
        %v1001 = vpop.trf.xlu0
        %1002 = vxpose.xlu0.b32.start [1/16] %v779, 128
        %1003 = vxpose.xlu0.b32.cont [2/16] %v781, 128
        %1004 = vxpose.xlu0.b32.cont [3/16] %v783, 128
        %1005 = vxpose.xlu0.b32.cont [4/16] %v785, 128
        %1006 = vxpose.xlu0.b32.cont [5/16] %v787, 128
        %1007 = vxpose.xlu0.b32.cont [6/16] %v789, 128
        %1008 = vxpose.xlu0.b32.cont [7/16] %v791, 128
        %1009 = vxpose.xlu0.b32.cont [8/16] %v793, 128
        %1010 = vxpose.xlu0.b32.cont [9/16] %v795, 128
        %1011 = vxpose.xlu0.b32.cont [10/16] %v797, 128
        %1012 = vxpose.xlu0.b32.cont [11/16] %v799, 128
        %1013 = vxpose.xlu0.b32.cont [12/16] %v801, 128
        %1014 = vxpose.xlu0.b32.cont [13/16] %v803, 128
        %1015 = vxpose.xlu0.b32.cont [14/16] %v805, 128
        %1016 = vxpose.xlu0.b32.cont [15/16] %v807, 128
        %1017 = vxpose.xlu0.b32.end [16/16] %v809, 128
        %v1018 = vpop.trf.xlu0
        %v1019 = vpop.trf.xlu0
        %v1020 = vpop.trf.xlu0
        %v1021 = vpop.trf.xlu0
        %v1022 = vpop.trf.xlu0
        %v1023 = vpop.trf.xlu0
        %v1024 = vpop.trf.xlu0
        %v1025 = vpop.trf.xlu0
        %v1026 = vpop.trf.xlu0
        %v1027 = vpop.trf.xlu0
        %v1028 = vpop.trf.xlu0
        %v1029 = vpop.trf.xlu0
        %v1030 = vpop.trf.xlu0
        %v1031 = vpop.trf.xlu0
        %v1032 = vpop.trf.xlu0
        %v1033 = vpop.trf.xlu0
        %1034 = vxpose.xlu0.b32.start [1/16] %v810, 128
        %1035 = vxpose.xlu0.b32.cont [2/16] %v812, 128
        %1036 = vxpose.xlu0.b32.cont [3/16] %v814, 128
        %1037 = vxpose.xlu0.b32.cont [4/16] %v816, 128
        %1038 = vxpose.xlu0.b32.cont [5/16] %v818, 128
        %1039 = vxpose.xlu0.b32.cont [6/16] %v820, 128
        %1040 = vxpose.xlu0.b32.cont [7/16] %v822, 128
        %1041 = vxpose.xlu0.b32.cont [8/16] %v824, 128
        %1042 = vxpose.xlu0.b32.cont [9/16] %v826, 128
        %1043 = vxpose.xlu0.b32.cont [10/16] %v828, 128
        %1044 = vxpose.xlu0.b32.cont [11/16] %v830, 128
        %1045 = vxpose.xlu0.b32.cont [12/16] %v832, 128
        %1046 = vxpose.xlu0.b32.cont [13/16] %v834, 128
        %1047 = vxpose.xlu0.b32.cont [14/16] %v836, 128
        %1048 = vxpose.xlu0.b32.cont [15/16] %v838, 128
        %1049 = vxpose.xlu0.b32.end [16/16] %v840, 128
        %v1050 = vpop.trf.xlu0
        %v1051 = vpop.trf.xlu0
        %v1052 = vpop.trf.xlu0
        %v1053 = vpop.trf.xlu0
        %v1054 = vpop.trf.xlu0
        %v1055 = vpop.trf.xlu0
        %v1056 = vpop.trf.xlu0
        %v1057 = vpop.trf.xlu0
        %v1058 = vpop.trf.xlu0
        %v1059 = vpop.trf.xlu0
        %v1060 = vpop.trf.xlu0
        %v1061 = vpop.trf.xlu0
        %v1062 = vpop.trf.xlu0
        %v1063 = vpop.trf.xlu0
        %v1064 = vpop.trf.xlu0
        %v1065 = vpop.trf.xlu0
        %1066 = vxpose.xlu0.b32.start [1/16] %v811, 128
        %1067 = vxpose.xlu0.b32.cont [2/16] %v813, 128
        %1068 = vxpose.xlu0.b32.cont [3/16] %v815, 128
        %1069 = vxpose.xlu0.b32.cont [4/16] %v817, 128
        %1070 = vxpose.xlu0.b32.cont [5/16] %v819, 128
        %1071 = vxpose.xlu0.b32.cont [6/16] %v821, 128
        %1072 = vxpose.xlu0.b32.cont [7/16] %v823, 128
        %1073 = vxpose.xlu0.b32.cont [8/16] %v825, 128
        %1074 = vxpose.xlu0.b32.cont [9/16] %v827, 128
        %1075 = vxpose.xlu0.b32.cont [10/16] %v829, 128
        %1076 = vxpose.xlu0.b32.cont [11/16] %v831, 128
        %1077 = vxpose.xlu0.b32.cont [12/16] %v833, 128
        %1078 = vxpose.xlu0.b32.cont [13/16] %v835, 128
        %1079 = vxpose.xlu0.b32.cont [14/16] %v837, 128
        %1080 = vxpose.xlu0.b32.cont [15/16] %v839, 128
        %1081 = vxpose.xlu0.b32.end [16/16] %v841, 128
        %v1082 = vpop.trf.xlu0
        %v1083 = vpop.trf.xlu0
        %v1084 = vpop.trf.xlu0
        %v1085 = vpop.trf.xlu0
        %v1086 = vpop.trf.xlu0
        %v1087 = vpop.trf.xlu0
        %v1088 = vpop.trf.xlu0
        %v1089 = vpop.trf.xlu0
        %v1090 = vpop.trf.xlu0
        %v1091 = vpop.trf.xlu0
        %v1092 = vpop.trf.xlu0
        %v1093 = vpop.trf.xlu0
        %v1094 = vpop.trf.xlu0
        %v1095 = vpop.trf.xlu0
        %v1096 = vpop.trf.xlu0
        %v1097 = vpop.trf.xlu0
        %v1098 = vpack.c.bf16 %v859, %v858
        %v1099 = vpack.c.bf16 %v923, %v922
        %v1100 = vpack.c.bf16 %v987, %v986
        %v1101 = vpack.c.bf16 %v1051, %v1050
        %v1102 = vpack.c.bf16 %v861, %v860
        %v1103 = vpack.c.bf16 %v925, %v924
        %v1104 = vpack.c.bf16 %v989, %v988
        %v1105 = vpack.c.bf16 %v1053, %v1052
        %v1106 = vpack.c.bf16 %v863, %v862
        %v1107 = vpack.c.bf16 %v927, %v926
        %v1108 = vpack.c.bf16 %v991, %v990
        %v1109 = vpack.c.bf16 %v1055, %v1054
        %v1110 = vpack.c.bf16 %v865, %v864
        %v1111 = vpack.c.bf16 %v929, %v928
        %v1112 = vpack.c.bf16 %v993, %v992
        %v1113 = vpack.c.bf16 %v1057, %v1056
        %v1114 = vpack.c.bf16 %v867, %v866
        %v1115 = vpack.c.bf16 %v931, %v930
        %v1116 = vpack.c.bf16 %v995, %v994
        %v1117 = vpack.c.bf16 %v1059, %v1058
        %v1118 = vpack.c.bf16 %v869, %v868
        %v1119 = vpack.c.bf16 %v933, %v932
        %v1120 = vpack.c.bf16 %v997, %v996
        %v1121 = vpack.c.bf16 %v1061, %v1060
        %v1122 = vpack.c.bf16 %v871, %v870
        %v1123 = vpack.c.bf16 %v935, %v934
        %v1124 = vpack.c.bf16 %v999, %v998
        %v1125 = vpack.c.bf16 %v1063, %v1062
        %v1126 = vpack.c.bf16 %v873, %v872
        %v1127 = vpack.c.bf16 %v937, %v936
        %v1128 = vpack.c.bf16 %v1001, %v1000
        %v1129 = vpack.c.bf16 %v1065, %v1064
        %v1130 = vpack.c.bf16 %v891, %v890
        %v1131 = vpack.c.bf16 %v955, %v954
        %v1132 = vpack.c.bf16 %v1019, %v1018
        %v1133 = vpack.c.bf16 %v1083, %v1082
        %v1134 = vpack.c.bf16 %v893, %v892
        %v1135 = vpack.c.bf16 %v957, %v956
        %v1136 = vpack.c.bf16 %v1021, %v1020
        %v1137 = vpack.c.bf16 %v1085, %v1084
        %v1138 = vpack.c.bf16 %v895, %v894
        %v1139 = vpack.c.bf16 %v959, %v958
        %v1140 = vpack.c.bf16 %v1023, %v1022
        %v1141 = vpack.c.bf16 %v1087, %v1086
        %v1142 = vpack.c.bf16 %v897, %v896
        %v1143 = vpack.c.bf16 %v961, %v960
        %v1144 = vpack.c.bf16 %v1025, %v1024
        %v1145 = vpack.c.bf16 %v1089, %v1088
        %v1146 = vpack.c.bf16 %v899, %v898
        %v1147 = vpack.c.bf16 %v963, %v962
        %v1148 = vpack.c.bf16 %v1027, %v1026
        %v1149 = vpack.c.bf16 %v1091, %v1090
        %v1150 = vpack.c.bf16 %v901, %v900
        %v1151 = vpack.c.bf16 %v965, %v964
        %v1152 = vpack.c.bf16 %v1029, %v1028
        %v1153 = vpack.c.bf16 %v1093, %v1092
        %v1154 = vpack.c.bf16 %v903, %v902
        %v1155 = vpack.c.bf16 %v967, %v966
        %v1156 = vpack.c.bf16 %v1031, %v1030
        %v1157 = vpack.c.bf16 %v1095, %v1094
        %v1158 = vpack.c.bf16 %v905, %v904
        %v1159 = vpack.c.bf16 %v969, %v968
        %v1160 = vpack.c.bf16 %v1033, %v1032
        %v1161 = vpack.c.bf16 %v1097, %v1096
        %v1226 = vunpack.c.l.b16 %v1098
        %v1227 = vunpack.c.l.b16 %v1099
        %v1228 = vunpack.c.l.b16 %v1100
        %v1229 = vunpack.c.l.b16 %v1101
        %v1230 = vunpack.c.h.b16 %v1098
        %v1231 = vunpack.c.h.b16 %v1099
        %v1232 = vunpack.c.h.b16 %v1100
        %v1233 = vunpack.c.h.b16 %v1101
        %v1234 = vunpack.c.l.b16 %v1102
        %v1235 = vunpack.c.l.b16 %v1103
        %v1236 = vunpack.c.l.b16 %v1104
        %v1237 = vunpack.c.l.b16 %v1105
        %v1238 = vunpack.c.h.b16 %v1102
        %v1239 = vunpack.c.h.b16 %v1103
        %v1240 = vunpack.c.h.b16 %v1104
        %v1241 = vunpack.c.h.b16 %v1105
        %v1242 = vunpack.c.l.b16 %v1106
        %v1243 = vunpack.c.l.b16 %v1107
        %v1244 = vunpack.c.l.b16 %v1108
        %v1245 = vunpack.c.l.b16 %v1109
        %v1246 = vunpack.c.h.b16 %v1106
        %v1247 = vunpack.c.h.b16 %v1107
        %v1248 = vunpack.c.h.b16 %v1108
        %v1249 = vunpack.c.h.b16 %v1109
        %v1250 = vunpack.c.l.b16 %v1110
        %v1251 = vunpack.c.l.b16 %v1111
        %v1252 = vunpack.c.l.b16 %v1112
        %v1253 = vunpack.c.l.b16 %v1113
        %v1254 = vunpack.c.h.b16 %v1110
        %v1255 = vunpack.c.h.b16 %v1111
        %v1256 = vunpack.c.h.b16 %v1112
        %v1257 = vunpack.c.h.b16 %v1113
        %v1258 = vunpack.c.l.b16 %v1114
        %v1259 = vunpack.c.l.b16 %v1115
        %v1260 = vunpack.c.l.b16 %v1116
        %v1261 = vunpack.c.l.b16 %v1117
        %v1262 = vunpack.c.h.b16 %v1114
        %v1263 = vunpack.c.h.b16 %v1115
        %v1264 = vunpack.c.h.b16 %v1116
        %v1265 = vunpack.c.h.b16 %v1117
        %v1266 = vunpack.c.l.b16 %v1118
        %v1267 = vunpack.c.l.b16 %v1119
        %v1268 = vunpack.c.l.b16 %v1120
        %v1269 = vunpack.c.l.b16 %v1121
        %v1270 = vunpack.c.h.b16 %v1118
        %v1271 = vunpack.c.h.b16 %v1119
        %v1272 = vunpack.c.h.b16 %v1120
        %v1273 = vunpack.c.h.b16 %v1121
        %v1274 = vunpack.c.l.b16 %v1122
        %v1275 = vunpack.c.l.b16 %v1123
        %v1276 = vunpack.c.l.b16 %v1124
        %v1277 = vunpack.c.l.b16 %v1125
        %v1278 = vunpack.c.h.b16 %v1122
        %v1279 = vunpack.c.h.b16 %v1123
        %v1280 = vunpack.c.h.b16 %v1124
        %v1281 = vunpack.c.h.b16 %v1125
        %v1282 = vunpack.c.l.b16 %v1126
        %v1283 = vunpack.c.l.b16 %v1127
        %v1284 = vunpack.c.l.b16 %v1128
        %v1285 = vunpack.c.l.b16 %v1129
        %v1286 = vunpack.c.h.b16 %v1126
        %v1287 = vunpack.c.h.b16 %v1127
        %v1288 = vunpack.c.h.b16 %v1128
        %v1289 = vunpack.c.h.b16 %v1129
        %v1290 = vunpack.c.l.b16 %v1130
        %v1291 = vunpack.c.l.b16 %v1131
        %v1292 = vunpack.c.l.b16 %v1132
        %v1293 = vunpack.c.l.b16 %v1133
        %v1294 = vunpack.c.h.b16 %v1130
        %v1295 = vunpack.c.h.b16 %v1131
        %v1296 = vunpack.c.h.b16 %v1132
        %v1297 = vunpack.c.h.b16 %v1133
        %v1298 = vunpack.c.l.b16 %v1134
        %v1299 = vunpack.c.l.b16 %v1135
        %v1300 = vunpack.c.l.b16 %v1136
        %v1301 = vunpack.c.l.b16 %v1137
        %v1302 = vunpack.c.h.b16 %v1134
        %v1303 = vunpack.c.h.b16 %v1135
        %v1304 = vunpack.c.h.b16 %v1136
        %v1305 = vunpack.c.h.b16 %v1137
        %v1306 = vunpack.c.l.b16 %v1138
        %v1307 = vunpack.c.l.b16 %v1139
        %v1308 = vunpack.c.l.b16 %v1140
        %v1309 = vunpack.c.l.b16 %v1141
        %v1310 = vunpack.c.h.b16 %v1138
        %v1311 = vunpack.c.h.b16 %v1139
        %v1312 = vunpack.c.h.b16 %v1140
        %v1313 = vunpack.c.h.b16 %v1141
        %v1314 = vunpack.c.l.b16 %v1142
        %v1315 = vunpack.c.l.b16 %v1143
        %v1316 = vunpack.c.l.b16 %v1144
        %v1317 = vunpack.c.l.b16 %v1145
        %v1318 = vunpack.c.h.b16 %v1142
        %v1319 = vunpack.c.h.b16 %v1143
        %v1320 = vunpack.c.h.b16 %v1144
        %v1321 = vunpack.c.h.b16 %v1145
        %v1322 = vunpack.c.l.b16 %v1146
        %v1323 = vunpack.c.l.b16 %v1147
        %v1324 = vunpack.c.l.b16 %v1148
        %v1325 = vunpack.c.l.b16 %v1149
        %v1326 = vunpack.c.h.b16 %v1146
        %v1327 = vunpack.c.h.b16 %v1147
        %v1328 = vunpack.c.h.b16 %v1148
        %v1329 = vunpack.c.h.b16 %v1149
        %v1330 = vunpack.c.l.b16 %v1150
        %v1331 = vunpack.c.l.b16 %v1151
        %v1332 = vunpack.c.l.b16 %v1152
        %v1333 = vunpack.c.l.b16 %v1153
        %v1334 = vunpack.c.h.b16 %v1150
        %v1335 = vunpack.c.h.b16 %v1151
        %v1336 = vunpack.c.h.b16 %v1152
        %v1337 = vunpack.c.h.b16 %v1153
        %v1338 = vunpack.c.l.b16 %v1154
        %v1339 = vunpack.c.l.b16 %v1155
        %v1340 = vunpack.c.l.b16 %v1156
        %v1341 = vunpack.c.l.b16 %v1157
        %v1342 = vunpack.c.h.b16 %v1154
        %v1343 = vunpack.c.h.b16 %v1155
        %v1344 = vunpack.c.h.b16 %v1156
        %v1345 = vunpack.c.h.b16 %v1157
        %v1346 = vunpack.c.l.b16 %v1158
        %v1347 = vunpack.c.l.b16 %v1159
        %v1348 = vunpack.c.l.b16 %v1160
        %v1349 = vunpack.c.l.b16 %v1161
        %v1350 = vunpack.c.h.b16 %v1158
        %v1351 = vunpack.c.h.b16 %v1159
        %v1352 = vunpack.c.h.b16 %v1160
        %v1353 = vunpack.c.h.b16 %v1161
        %v1354 = vpack.c.b16 %v1227, %v1226
        %v1355 = vpack.c.b16 %v1229, %v1228
        %v1356 = vpack.c.b16 %v1231, %v1230
        %v1357 = vpack.c.b16 %v1233, %v1232
        %v1358 = vpack.c.b16 %v1235, %v1234
        %v1359 = vpack.c.b16 %v1237, %v1236
        %v1360 = vpack.c.b16 %v1239, %v1238
        %v1361 = vpack.c.b16 %v1241, %v1240
        %v1362 = vpack.c.b16 %v1243, %v1242
        %v1363 = vpack.c.b16 %v1245, %v1244
        %v1364 = vpack.c.b16 %v1247, %v1246
        %v1365 = vpack.c.b16 %v1249, %v1248
        %v1366 = vpack.c.b16 %v1251, %v1250
        %v1367 = vpack.c.b16 %v1253, %v1252
        %v1368 = vpack.c.b16 %v1255, %v1254
        %v1369 = vpack.c.b16 %v1257, %v1256
        %v1370 = vpack.c.b16 %v1259, %v1258
        %v1371 = vpack.c.b16 %v1261, %v1260
        %v1372 = vpack.c.b16 %v1263, %v1262
        %v1373 = vpack.c.b16 %v1265, %v1264
        %v1374 = vpack.c.b16 %v1267, %v1266
        %v1375 = vpack.c.b16 %v1269, %v1268
        %v1376 = vpack.c.b16 %v1271, %v1270
        %v1377 = vpack.c.b16 %v1273, %v1272
        %v1378 = vpack.c.b16 %v1275, %v1274
        %v1379 = vpack.c.b16 %v1277, %v1276
        %v1380 = vpack.c.b16 %v1279, %v1278
        %v1381 = vpack.c.b16 %v1281, %v1280
        %v1382 = vpack.c.b16 %v1283, %v1282
        %v1383 = vpack.c.b16 %v1285, %v1284
        %v1384 = vpack.c.b16 %v1287, %v1286
        %v1385 = vpack.c.b16 %v1289, %v1288
        %v1386 = vpack.c.b16 %v1291, %v1290
        %v1387 = vpack.c.b16 %v1293, %v1292
        %v1388 = vpack.c.b16 %v1295, %v1294
        %v1389 = vpack.c.b16 %v1297, %v1296
        %v1390 = vpack.c.b16 %v1299, %v1298
        %v1391 = vpack.c.b16 %v1301, %v1300
        %v1392 = vpack.c.b16 %v1303, %v1302
        %v1393 = vpack.c.b16 %v1305, %v1304
        %v1394 = vpack.c.b16 %v1307, %v1306
        %v1395 = vpack.c.b16 %v1309, %v1308
        %v1396 = vpack.c.b16 %v1311, %v1310
        %v1397 = vpack.c.b16 %v1313, %v1312
        %v1398 = vpack.c.b16 %v1315, %v1314
        %v1399 = vpack.c.b16 %v1317, %v1316
        %v1400 = vpack.c.b16 %v1319, %v1318
        %v1401 = vpack.c.b16 %v1321, %v1320
        %v1402 = vpack.c.b16 %v1323, %v1322
        %v1403 = vpack.c.b16 %v1325, %v1324
        %v1404 = vpack.c.b16 %v1327, %v1326
        %v1405 = vpack.c.b16 %v1329, %v1328
        %v1406 = vpack.c.b16 %v1331, %v1330
        %v1407 = vpack.c.b16 %v1333, %v1332
        %v1408 = vpack.c.b16 %v1335, %v1334
        %v1409 = vpack.c.b16 %v1337, %v1336
        %v1410 = vpack.c.b16 %v1339, %v1338
        %v1411 = vpack.c.b16 %v1341, %v1340
        %v1412 = vpack.c.b16 %v1343, %v1342
        %v1413 = vpack.c.b16 %v1345, %v1344
        %v1414 = vpack.c.b16 %v1347, %v1346
        %v1415 = vpack.c.b16 %v1349, %v1348
        %v1416 = vpack.c.b16 %v1351, %v1350
        %v1417 = vpack.c.b16 %v1353, %v1352
        %1482 = vst [vmem:[%s135] sm:$0xff] %v1354
        %1483 = vst [vmem:[%s135 + $0x8] sm:$0xff] %v1355
        %1484 = vst [vmem:[%s135 + $0x10] sm:$0xff] %v1356
        %1485 = vst [vmem:[%s135 + $0x18] sm:$0xff] %v1357
        %1486 = vst [vmem:[%s135 + $0x20] sm:$0xff] %v1358
        %1487 = vst [vmem:[%s135 + $0x28] sm:$0xff] %v1359
        %1488 = vst [vmem:[%s135 + $0x30] sm:$0xff] %v1360
        %1489 = vst [vmem:[%s135 + $0x38] sm:$0xff] %v1361
        %1490 = vst [vmem:[%s135 + $0x40] sm:$0xff] %v1362
        %1491 = vst [vmem:[%s135 + $0x48] sm:$0xff] %v1363
        %1492 = vst [vmem:[%s135 + $0x50] sm:$0xff] %v1364
        %1493 = vst [vmem:[%s135 + $0x58] sm:$0xff] %v1365
        %1494 = vst [vmem:[%s135 + $0x60] sm:$0xff] %v1366
        %1495 = vst [vmem:[%s135 + $0x68] sm:$0xff] %v1367
        %1496 = vst [vmem:[%s135 + $0x70] sm:$0xff] %v1368
        %1497 = vst [vmem:[%s135 + $0x78] sm:$0xff] %v1369
        %1498 = vst [vmem:[%s135 + $0x80] sm:$0xff] %v1370
        %1499 = vst [vmem:[%s135 + $0x88] sm:$0xff] %v1371
        %1500 = vst [vmem:[%s135 + $0x90] sm:$0xff] %v1372
        %1501 = vst [vmem:[%s135 + $0x98] sm:$0xff] %v1373
        %1502 = vst [vmem:[%s135 + $0xa0] sm:$0xff] %v1374
        %1503 = vst [vmem:[%s135 + $0xa8] sm:$0xff] %v1375
        %1504 = vst [vmem:[%s135 + $0xb0] sm:$0xff] %v1376
        %1505 = vst [vmem:[%s135 + $0xb8] sm:$0xff] %v1377
        %1506 = vst [vmem:[%s135 + $0xc0] sm:$0xff] %v1378
        %1507 = vst [vmem:[%s135 + $0xc8] sm:$0xff] %v1379
        %1508 = vst [vmem:[%s135 + $0xd0] sm:$0xff] %v1380
        %1509 = vst [vmem:[%s135 + $0xd8] sm:$0xff] %v1381
        %1510 = vst [vmem:[%s135 + $0xe0] sm:$0xff] %v1382
        %1511 = vst [vmem:[%s135 + $0xe8] sm:$0xff] %v1383
        %1512 = vst [vmem:[%s135 + $0xf0] sm:$0xff] %v1384
        %1513 = vst [vmem:[%s135 + $0xf8] sm:$0xff] %v1385
        %1514 = vst [vmem:[%s135 + $0x100] sm:$0xff] %v1386
        %1515 = vst [vmem:[%s135 + $0x108] sm:$0xff] %v1387
        %1516 = vst [vmem:[%s135 + $0x110] sm:$0xff] %v1388
        %1517 = vst [vmem:[%s135 + $0x118] sm:$0xff] %v1389
        %1518 = vst [vmem:[%s135 + $0x120] sm:$0xff] %v1390
        %1519 = vst [vmem:[%s135 + $0x128] sm:$0xff] %v1391
        %1520 = vst [vmem:[%s135 + $0x130] sm:$0xff] %v1392
        %1521 = vst [vmem:[%s135 + $0x138] sm:$0xff] %v1393
        %1522 = vst [vmem:[%s135 + $0x140] sm:$0xff] %v1394
        %1523 = vst [vmem:[%s135 + $0x148] sm:$0xff] %v1395
        %1524 = vst [vmem:[%s135 + $0x150] sm:$0xff] %v1396
        %1525 = vst [vmem:[%s135 + $0x158] sm:$0xff] %v1397
        %1526 = vst [vmem:[%s135 + $0x160] sm:$0xff] %v1398
        %1527 = vst [vmem:[%s135 + $0x168] sm:$0xff] %v1399
        %1528 = vst [vmem:[%s135 + $0x170] sm:$0xff] %v1400
        %1529 = vst [vmem:[%s135 + $0x178] sm:$0xff] %v1401
        %1530 = vst [vmem:[%s135 + $0x180] sm:$0xff] %v1402
        %1531 = vst [vmem:[%s135 + $0x188] sm:$0xff] %v1403
        %1532 = vst [vmem:[%s135 + $0x190] sm:$0xff] %v1404
        %1533 = vst [vmem:[%s135 + $0x198] sm:$0xff] %v1405
        %1534 = vst [vmem:[%s135 + $0x1a0] sm:$0xff] %v1406
        %1535 = vst [vmem:[%s135 + $0x1a8] sm:$0xff] %v1407
        %1536 = vst [vmem:[%s135 + $0x1b0] sm:$0xff] %v1408
        %1537 = vst [vmem:[%s135 + $0x1b8] sm:$0xff] %v1409
        %1538 = vst [vmem:[%s135 + $0x1c0] sm:$0xff] %v1410
        %1539 = vst [vmem:[%s135 + $0x1c8] sm:$0xff] %v1411
        %1540 = vst [vmem:[%s135 + $0x1d0] sm:$0xff] %v1412
        %1541 = vst [vmem:[%s135 + $0x1d8] sm:$0xff] %v1413
        %1542 = vst [vmem:[%s135 + $0x1e0] sm:$0xff] %v1414
        %1543 = vst [vmem:[%s135 + $0x1e8] sm:$0xff] %v1415
        %1544 = vst [vmem:[%s135 + $0x1f0] sm:$0xff] %v1416
        %1545 = vst [vmem:[%s135 + $0x1f8] sm:$0xff] %v1417
        %s1546 = sand.u32 %s52, 1
        %s1547 = scalar_lea.sflag [#allocation4], %s1546
        %s1548 = sand.u32 %s52, 1
        %s1549 = smul.addr %s1548, 512
        %s1550 = scalar_lea.vmem [#allocation5], %s1549
        // Predicated region
        $region29: #{tpu_custom_call.1} parent=23 // pred_check
          %p1551 = pneg %p62
        $region30: #{tpu_custom_call.1} parent=23 // pred_check_branch
          %1553 = sbr.rel (%p1551) target = $region32
        $region31: #{tpu_custom_call.1} parent=23 // pred_region
          %s1554 = smul.u32 4, %s18
          %s1556 = ssub.s32 8192, 8192
          %1557 = vsyncadd %s1547, %s1556
          %s1558 = smul.addr %s1554, 64
          %s1559 = scalar_lea.hbm %s1, %s1558
          %s1560 = sshll.u32 %s1550, 4
          %s1561 = int_to_ptr.vmem [resolvable:$true] %s1560
          %1566 = dma.vmem_to_hbm [thread:$0]  %s1561, 8192, %s1559, %s1547, 256, 512, 16
        $region32: #{tpu_custom_call.1} parent=23 // pred_fallthru
          _
      $region24: #{tpu_custom_call.1} parent=5 // pred_fallthru
        _
      %p1567 = scmp.le.s32.totalorder 2, %s13
      // Predicated region
      $region33: #{tpu_custom_call.1} parent=5 // pred_check
        %p1568 = pneg %p1567
      $region34: #{tpu_custom_call.1} parent=5 // pred_check_branch
        %1570 = sbr.rel (%p1568) target = $region36
      $region35: #{tpu_custom_call.1} parent=5 // pred_region
        %s1571 = ssub.s32 %s13, 2
        // Predicated region
        $region37: #{tpu_custom_call.1} parent=35 // pred_check
          %p1572 = pneg %p68
        $region38: #{tpu_custom_call.1} parent=35 // pred_check_branch
          %1574 = sbr.rel (%p1572) target = $region40
        $region39: #{tpu_custom_call.1} parent=35 // pred_region
          %s1575 = sand.u32 %s53, 1
          %s1576 = scalar_lea.sflag [#allocation4], %s1575
          %s1577 = sand.u32 %s53, 1
          %s1578 = smul.addr %s1577, 512
          %s1579 = scalar_lea.vmem [#allocation5], %s1578
          %1580 = dma.done %s1576, 8192
        $region40: #{tpu_custom_call.1} parent=35 // pred_fallthru
          _
      $region36: #{tpu_custom_call.1} parent=5 // pred_fallthru
        _
    $region6: #{tpu_custom_call.1} parent=1 // loop_footer
      %s17 = sadd.s32 1, %s13
    $region7: #{tpu_custom_call.1} parent=1 // loop_footer_branch
      %12 = sbr.rel target = $region3
    $region8: #{tpu_custom_call.1} parent=1 // loop_exit
      _
    %1581 = vsyncpa [#allocation3], 1
    %s1582 = scalar_lea.sflag [#allocation3], 1
    %1583 = vsyncpa %s1582, 1
    %1584 = vsyncpa [#allocation4], 1
    %s1585 = scalar_lea.sflag [#allocation4], 1
    %1586 = vsyncpa %s1585, 1

</llo_original>
